<compile_context>
chip_gen: v6e
topology: v6e:2x2x1
jax: 0.10.0
libtpu: 0.0.40
codegen_flags: <defaults>
</compile_context>

<pallas_src>
import functools

import jax
import jax.numpy as jnp
from jax.experimental import pallas as pl
from jax.experimental.pallas import tpu as pltpu


def _basic_block_kernel(x_ref, m1_ref, m2_ref, w1_ref, g1_ref, b1_ref,
                        w2_ref, g2_ref, b2_ref, out_ref,
                        *, taps, margin, mid, core, inv_count, eps):
    """Fused conv3x3 -> BN -> ReLU -> conv3x3 -> BN -> +identity -> ReLU.

    x_ref  : (8, core + 4*margin) f32  padded-flat input, channel-major
    m1_ref : (1, mid)  f32  validity mask on the h1 grid
    m2_ref : (1, core) f32  validity mask on the output grid
    w*_ref : (8, 72)   f32  conv weights, K index = tap*8 + ci (im2col order)
    g*/b*  : (8, 1)    f32  BN affine params (channels zero-padded to 8)
    out_ref: (8, core) f32  lane-dense output (core is a multiple of 128)
    """

    def conv3x3(src, w2d, out_len):
        # 9 taps = static lane-offset slices of the margin-extended activation,
        # fused into a single K=72 matmul (one MXU issue per conv).
        pieces = [src[:, margin + off: margin + off + out_len] for off in taps]
        patches = jnp.concatenate(pieces, axis=0)                 # (72, out_len)
        return jnp.dot(w2d, patches, preferred_element_type=jnp.float32)

    def bn_fold(y, mask, gamma, beta):
        # One-pass training-mode BN over the valid positions only,
        # with gamma*rsqrt folded into a single per-channel scale + shift.
        ym = y * mask                                   # garbage lanes -> 0
        s1 = jnp.sum(ym, axis=1, keepdims=True)         # (8, 1)
        s2 = jnp.sum(ym * y, axis=1, keepdims=True)     # (8, 1) sum of y^2
        mean = s1 * inv_count
        var = s2 * inv_count - mean * mean              # biased variance
        scale = gamma * jax.lax.rsqrt(var + eps)
        shift = beta - mean * scale
        return y * scale + shift                        # one FMA per element

    x = x_ref[...]                                      # (8, core + 4*margin)
    m1 = m1_ref[...]                                    # (1, mid)
    m2 = m2_ref[...]                                    # (1, core)

    y1 = conv3x3(x, w1_ref[...], mid)                   # (8, mid)
    # The mask multiply re-zeroes every non-valid position so it acts as the
    # zero padding of the second conv.
    h1 = jnp.maximum(bn_fold(y1, m1, g1_ref[...], b1_ref[...]), 0.0) * m1

    y2 = conv3x3(h1, w2_ref[...], core)                 # (8, core)
    z2 = bn_fold(y2, m2, g2_ref[...], b2_ref[...])

    x_core = x[:, 2 * margin: 2 * margin + core]        # identity shortcut
    out_ref[...] = jnp.maximum(z2 + x_core, 0.0)


@jax.jit
def basic_block_pallas(x_nchw, w1_oihw, g1, b1, w2_oihw, g2, b2):
    """Wrapper: NCHW in/out (PyTorch convention); all repacking done in XLA."""
    N, C, H, W = x_nchw.shape
    Hp, Wp = H + 2, W + 2
    CP = 8                                              # channels -> one sublane tile
    margin = ((Wp + 1 + 31) // 32) * 32                 # >= max |tap offset| = Wp+1
    plane_raw = Hp * Wp                                 # 324
    plane = ((plane_raw + 127) // 128) * 128            # per-image stride (384)
    core = N * plane                                    # output lane extent (768)
    mid = core + 2 * margin                             # h1 lane extent
    in_w = core + 4 * margin                            # input lane extent

    taps = tuple((dy - 1) * Wp + (dx - 1) for dy in range(3) for dx in range(3))

    # ---- input: NCHW -> channel-major, zero-padded, flattened, margin-extended
    xc = jnp.transpose(x_nchw, (1, 0, 2, 3)).astype(jnp.float32)     # (C,N,H,W)
    xc = jnp.pad(xc, ((0, CP - C), (0, 0), (1, 1), (1, 1)))          # (8,N,Hp,Wp)
    xc = xc.reshape(CP, N, plane_raw)
    xc = jnp.pad(xc, ((0, 0), (0, 0), (0, plane - plane_raw)))       # (8,N,plane)
    xc = xc.reshape(CP, core)
    x_ext = jnp.pad(xc, ((0, 0), (2 * margin, 2 * margin)))          # (8, in_w)
    assert x_ext.shape == (CP, in_w)

    # ---- validity masks (1 at real output pixels, 0 at padding/margins) ----
    pm = jnp.zeros((Hp, Wp), jnp.float32).at[1:H + 1, 1:W + 1].set(1.0)
    cm = jnp.pad(pm.reshape(plane_raw), (0, plane - plane_raw))
    cm = jnp.tile(cm, N)                                             # (core,)
    mask2 = cm.reshape(1, core)
    mask1 = jnp.pad(cm, (margin, margin)).reshape(1, mid)

    # ---- weights: OIHW -> (8, 72) im2col layout, K index = tap*8 + ci ----
    def pack_w(w):
        w = jnp.transpose(w, (0, 2, 3, 1)).astype(jnp.float32)       # (Co,3,3,Ci)
        w = jnp.pad(w, ((0, CP - C), (0, 0), (0, 0), (0, CP - C)))   # (8,3,3,8)
        return w.reshape(CP, 9 * CP)                                 # (8, 72)

    def pack_v(v):
        return jnp.pad(v.astype(jnp.float32).reshape(-1),
                       (0, CP - C)).reshape(CP, 1)

    kernel = functools.partial(
        _basic_block_kernel, taps=taps, margin=margin, mid=mid, core=core,
        inv_count=1.0 / float(N * H * W), eps=1e-5)

    out_flat = pl.pallas_call(
        kernel,
        out_shape=jax.ShapeDtypeStruct((CP, core), jnp.float32),
        # Small problem: single grid point, every operand fully resident in VMEM.
        in_specs=[pl.BlockSpec(memory_space=pltpu.MemorySpace.VMEM)] * 9,
        out_specs=pl.BlockSpec(memory_space=pltpu.MemorySpace.VMEM),
    )(x_ext, mask1, mask2, pack_w(w1_oihw), pack_v(g1), pack_v(b1),
      pack_w(w2_oihw), pack_v(g2), pack_v(b2))

    # ---- unpack: (8, core) lane-dense -> NCHW valid pixels ----
    out = out_flat[:C].reshape(C, N, plane)[:, :, :plane_raw]
    out = out.reshape(C, N, Hp, Wp)[:, :, 1:H + 1, 1:W + 1]
    return jnp.transpose(out, (1, 0, 2, 3))                          # NCHW


def basic_block_reference(x, w1, g1, b1, w2, g2, b2, eps=1e-5):
    """Pure-JAX reference (NCHW, OIHW), mirroring the PyTorch forward."""
    def conv(x, w):
        return jax.lax.conv_general_dilated(
            x, w, window_strides=(1, 1), padding='SAME',
            dimension_numbers=('NCHW', 'OIHW', 'NCHW'))

    def bn(y, g, b):
        mean = y.mean(axis=(0, 2, 3), keepdims=True)
        var = ((y - mean) ** 2).mean(axis=(0, 2, 3), keepdims=True)
        return ((y - mean) / jnp.sqrt(var + eps)) * g.reshape(1, -1, 1, 1) \
               + b.reshape(1, -1, 1, 1)

    out = jax.nn.relu(bn(conv(x, w1), g1, b1))
    out = bn(conv(out, w2), g2, b2)
    return jax.nn.relu(out + x)


if __name__ == "__main__":
    # BasicBlock(in_planes=4, planes=4, stride=1): identity shortcut.
    N, C, H, W = 2, 4, 16, 16

    key = jax.random.PRNGKey(0)
    kx, kw1, kw2, kg1, kb1, kg2, kb2 = jax.random.split(key, 7)

    x = jax.random.normal(kx, (N, C, H, W), dtype=jnp.float32)
    # conv weights, PyTorch layout (Cout, Cin, 3, 3), bias=False
    w1 = 0.1 * jax.random.normal(kw1, (C, C, 3, 3), dtype=jnp.float32)
    w2 = 0.1 * jax.random.normal(kw2, (C, C, 3, 3), dtype=jnp.float32)
    # BN affine params (non-trivial to exercise the math)
    g1 = 1.0 + 0.1 * jax.random.normal(kg1, (C,), dtype=jnp.float32)
    b1 = 0.1 * jax.random.normal(kb1, (C,), dtype=jnp.float32)
    g2 = 1.0 + 0.1 * jax.random.normal(kg2, (C,), dtype=jnp.float32)
    b2 = 0.1 * jax.random.normal(kb2, (C,), dtype=jnp.float32)

    out = jax.block_until_ready(basic_block_pallas(x, w1, g1, b1, w2, g2, b2))
    ref = jax.block_until_ready(basic_block_reference(x, w1, g1, b1, w2, g2, b2))

    assert out.shape == (N, C, H, W)
    err = jnp.max(jnp.abs(out - ref))
    assert jnp.allclose(out, ref, atol=1e-3, rtol=1e-3), f"max abs err = {err}"

    print("KERNEL_OK")
</pallas_src>

<mosaic_0001>
module attributes {stable_mosaic.version = 11 : i64} {
  func.func @_basic_block_kernel(%arg0: memref<8x896xf32, #tpu.memory_space<vmem>>, %arg1: memref<1x832xf32, #tpu.memory_space<vmem>>, %arg2: memref<1x768xf32, #tpu.memory_space<vmem>>, %arg3: memref<8x72xf32, #tpu.memory_space<vmem>>, %arg4: memref<8x1xf32, #tpu.memory_space<vmem>>, %arg5: memref<8x1xf32, #tpu.memory_space<vmem>>, %arg6: memref<8x72xf32, #tpu.memory_space<vmem>>, %arg7: memref<8x1xf32, #tpu.memory_space<vmem>>, %arg8: memref<8x1xf32, #tpu.memory_space<vmem>>, %arg9: memref<8x768xf32, #tpu.memory_space<vmem>>) attributes {dimension_semantics = [], scalar_prefetch = 0 : i64, scratch_operands = 0 : i64, tpu.core_type = #tpu.core_type<tc>} {
    %c0 = arith.constant 0 : index
    %c0_0 = arith.constant 0 : index
    %0 = vector.load %arg0[%c0, %c0_0] : memref<8x896xf32, #tpu.memory_space<vmem>>, vector<8x896xf32>
    %c0_1 = arith.constant 0 : index
    %c0_2 = arith.constant 0 : index
    %1 = vector.load %arg1[%c0_1, %c0_2] : memref<1x832xf32, #tpu.memory_space<vmem>>, vector<1x832xf32>
    %c0_3 = arith.constant 0 : index
    %c0_4 = arith.constant 0 : index
    %2 = vector.load %arg2[%c0_3, %c0_4] : memref<1x768xf32, #tpu.memory_space<vmem>>, vector<1x768xf32>
    %c0_5 = arith.constant 0 : index
    %c0_6 = arith.constant 0 : index
    %3 = vector.load %arg3[%c0_5, %c0_6] : memref<8x72xf32, #tpu.memory_space<vmem>>, vector<8x72xf32>
    %4 = vector.extract_strided_slice %0 {offsets = [0, 13], sizes = [8, 832], strides = [1, 1]} : vector<8x896xf32> to vector<8x832xf32>
    %5 = vector.extract_strided_slice %0 {offsets = [0, 14], sizes = [8, 832], strides = [1, 1]} : vector<8x896xf32> to vector<8x832xf32>
    %6 = vector.extract_strided_slice %0 {offsets = [0, 15], sizes = [8, 832], strides = [1, 1]} : vector<8x896xf32> to vector<8x832xf32>
    %7 = vector.extract_strided_slice %0 {offsets = [0, 31], sizes = [8, 832], strides = [1, 1]} : vector<8x896xf32> to vector<8x832xf32>
    %8 = vector.extract_strided_slice %0 {offsets = [0, 32], sizes = [8, 832], strides = [1, 1]} : vector<8x896xf32> to vector<8x832xf32>
    %9 = vector.extract_strided_slice %0 {offsets = [0, 33], sizes = [8, 832], strides = [1, 1]} : vector<8x896xf32> to vector<8x832xf32>
    %10 = vector.extract_strided_slice %0 {offsets = [0, 49], sizes = [8, 832], strides = [1, 1]} : vector<8x896xf32> to vector<8x832xf32>
    %11 = vector.extract_strided_slice %0 {offsets = [0, 50], sizes = [8, 832], strides = [1, 1]} : vector<8x896xf32> to vector<8x832xf32>
    %12 = vector.extract_strided_slice %0 {offsets = [0, 51], sizes = [8, 832], strides = [1, 1]} : vector<8x896xf32> to vector<8x832xf32>
    %13 = tpu.concatenate %4, %5, %6, %7, %8, %9, %10, %11, %12 in 0 : vector<8x832xf32>, vector<8x832xf32>, vector<8x832xf32>, vector<8x832xf32>, vector<8x832xf32>, vector<8x832xf32>, vector<8x832xf32>, vector<8x832xf32>, vector<8x832xf32> -> vector<72x832xf32>
    %cst = arith.constant dense<0.000000e+00> : vector<8x832xf32>
    %14 = tpu.matmul %3, %13, %cst {dimension_numbers = #tpu.dot_dimension_numbers<[1], [0], [0], [1], [0, 0, 1, 1], [], []>} : vector<8x72xf32>, vector<72x832xf32>, vector<8x832xf32> -> vector<8x832xf32>
    %c0_7 = arith.constant 0 : index
    %c0_8 = arith.constant 0 : index
    %15 = vector.load %arg4[%c0_7, %c0_8] : memref<8x1xf32, #tpu.memory_space<vmem>>, vector<8x1xf32>
    %c0_9 = arith.constant 0 : index
    %c0_10 = arith.constant 0 : index
    %16 = vector.load %arg5[%c0_9, %c0_10] : memref<8x1xf32, #tpu.memory_space<vmem>>, vector<8x1xf32>
    %17 = vector.broadcast %1 : vector<1x832xf32> to vector<8x832xf32>
    %18 = arith.mulf %14, %17 : vector<8x832xf32>
    %cst_11 = arith.constant dense<0.000000e+00> : vector<8xf32>
    %19 = vector.multi_reduction <add>, %18, %cst_11 [1] : vector<8x832xf32> to vector<8xf32>
    %20 = vector.shape_cast %19 : vector<8xf32> to vector<8x1xf32>
    %21 = arith.mulf %18, %14 : vector<8x832xf32>
    %cst_12 = arith.constant dense<0.000000e+00> : vector<8xf32>
    %22 = vector.multi_reduction <add>, %21, %cst_12 [1] : vector<8x832xf32> to vector<8xf32>
    %23 = vector.shape_cast %22 : vector<8xf32> to vector<8x1xf32>
    %cst_13 = arith.constant 0.001953125 : f32
    %24 = vector.broadcast %cst_13 : f32 to vector<8x1xf32>
    %25 = arith.mulf %20, %24 : vector<8x1xf32>
    %cst_14 = arith.constant 0.001953125 : f32
    %26 = vector.broadcast %cst_14 : f32 to vector<8x1xf32>
    %27 = arith.mulf %23, %26 : vector<8x1xf32>
    %28 = arith.mulf %25, %25 : vector<8x1xf32>
    %29 = arith.subf %27, %28 : vector<8x1xf32>
    %cst_15 = arith.constant 9.99999974E-6 : f32
    %30 = vector.broadcast %cst_15 : f32 to vector<8x1xf32>
    %31 = arith.addf %29, %30 : vector<8x1xf32>
    %32 = math.rsqrt %31 : vector<8x1xf32>
    %33 = arith.mulf %15, %32 : vector<8x1xf32>
    %34 = arith.mulf %25, %33 : vector<8x1xf32>
    %35 = arith.subf %16, %34 : vector<8x1xf32>
    %36 = vector.broadcast %33 : vector<8x1xf32> to vector<8x832xf32>
    %37 = arith.mulf %14, %36 : vector<8x832xf32>
    %38 = vector.broadcast %35 : vector<8x1xf32> to vector<8x832xf32>
    %39 = arith.addf %37, %38 : vector<8x832xf32>
    %cst_16 = arith.constant 0.000000e+00 : f32
    %40 = vector.broadcast %cst_16 : f32 to vector<8x832xf32>
    %41 = arith.maximumf %39, %40 : vector<8x832xf32>
    %42 = vector.broadcast %1 : vector<1x832xf32> to vector<8x832xf32>
    %43 = arith.mulf %41, %42 : vector<8x832xf32>
    %c0_17 = arith.constant 0 : index
    %c0_18 = arith.constant 0 : index
    %44 = vector.load %arg6[%c0_17, %c0_18] : memref<8x72xf32, #tpu.memory_space<vmem>>, vector<8x72xf32>
    %45 = vector.extract_strided_slice %43 {offsets = [0, 13], sizes = [8, 768], strides = [1, 1]} : vector<8x832xf32> to vector<8x768xf32>
    %46 = vector.extract_strided_slice %43 {offsets = [0, 14], sizes = [8, 768], strides = [1, 1]} : vector<8x832xf32> to vector<8x768xf32>
    %47 = vector.extract_strided_slice %43 {offsets = [0, 15], sizes = [8, 768], strides = [1, 1]} : vector<8x832xf32> to vector<8x768xf32>
    %48 = vector.extract_strided_slice %43 {offsets = [0, 31], sizes = [8, 768], strides = [1, 1]} : vector<8x832xf32> to vector<8x768xf32>
    %49 = vector.extract_strided_slice %43 {offsets = [0, 32], sizes = [8, 768], strides = [1, 1]} : vector<8x832xf32> to vector<8x768xf32>
    %50 = vector.extract_strided_slice %43 {offsets = [0, 33], sizes = [8, 768], strides = [1, 1]} : vector<8x832xf32> to vector<8x768xf32>
    %51 = vector.extract_strided_slice %43 {offsets = [0, 49], sizes = [8, 768], strides = [1, 1]} : vector<8x832xf32> to vector<8x768xf32>
    %52 = vector.extract_strided_slice %43 {offsets = [0, 50], sizes = [8, 768], strides = [1, 1]} : vector<8x832xf32> to vector<8x768xf32>
    %53 = vector.extract_strided_slice %43 {offsets = [0, 51], sizes = [8, 768], strides = [1, 1]} : vector<8x832xf32> to vector<8x768xf32>
    %54 = tpu.concatenate %45, %46, %47, %48, %49, %50, %51, %52, %53 in 0 : vector<8x768xf32>, vector<8x768xf32>, vector<8x768xf32>, vector<8x768xf32>, vector<8x768xf32>, vector<8x768xf32>, vector<8x768xf32>, vector<8x768xf32>, vector<8x768xf32> -> vector<72x768xf32>
    %cst_19 = arith.constant dense<0.000000e+00> : vector<8x768xf32>
    %55 = tpu.matmul %44, %54, %cst_19 {dimension_numbers = #tpu.dot_dimension_numbers<[1], [0], [0], [1], [0, 0, 1, 1], [], []>} : vector<8x72xf32>, vector<72x768xf32>, vector<8x768xf32> -> vector<8x768xf32>
    %c0_20 = arith.constant 0 : index
    %c0_21 = arith.constant 0 : index
    %56 = vector.load %arg7[%c0_20, %c0_21] : memref<8x1xf32, #tpu.memory_space<vmem>>, vector<8x1xf32>
    %c0_22 = arith.constant 0 : index
    %c0_23 = arith.constant 0 : index
    %57 = vector.load %arg8[%c0_22, %c0_23] : memref<8x1xf32, #tpu.memory_space<vmem>>, vector<8x1xf32>
    %58 = vector.broadcast %2 : vector<1x768xf32> to vector<8x768xf32>
    %59 = arith.mulf %55, %58 : vector<8x768xf32>
    %cst_24 = arith.constant dense<0.000000e+00> : vector<8xf32>
    %60 = vector.multi_reduction <add>, %59, %cst_24 [1] : vector<8x768xf32> to vector<8xf32>
    %61 = vector.shape_cast %60 : vector<8xf32> to vector<8x1xf32>
    %62 = arith.mulf %59, %55 : vector<8x768xf32>
    %cst_25 = arith.constant dense<0.000000e+00> : vector<8xf32>
    %63 = vector.multi_reduction <add>, %62, %cst_25 [1] : vector<8x768xf32> to vector<8xf32>
    %64 = vector.shape_cast %63 : vector<8xf32> to vector<8x1xf32>
    %cst_26 = arith.constant 0.001953125 : f32
    %65 = vector.broadcast %cst_26 : f32 to vector<8x1xf32>
    %66 = arith.mulf %61, %65 : vector<8x1xf32>
    %cst_27 = arith.constant 0.001953125 : f32
    %67 = vector.broadcast %cst_27 : f32 to vector<8x1xf32>
    %68 = arith.mulf %64, %67 : vector<8x1xf32>
    %69 = arith.mulf %66, %66 : vector<8x1xf32>
    %70 = arith.subf %68, %69 : vector<8x1xf32>
    %cst_28 = arith.constant 9.99999974E-6 : f32
    %71 = vector.broadcast %cst_28 : f32 to vector<8x1xf32>
    %72 = arith.addf %70, %71 : vector<8x1xf32>
    %73 = math.rsqrt %72 : vector<8x1xf32>
    %74 = arith.mulf %56, %73 : vector<8x1xf32>
    %75 = arith.mulf %66, %74 : vector<8x1xf32>
    %76 = arith.subf %57, %75 : vector<8x1xf32>
    %77 = vector.broadcast %74 : vector<8x1xf32> to vector<8x768xf32>
    %78 = arith.mulf %55, %77 : vector<8x768xf32>
    %79 = vector.broadcast %76 : vector<8x1xf32> to vector<8x768xf32>
    %80 = arith.addf %78, %79 : vector<8x768xf32>
    %81 = vector.extract_strided_slice %0 {offsets = [0, 64], sizes = [8, 768], strides = [1, 1]} : vector<8x896xf32> to vector<8x768xf32>
    %82 = arith.addf %80, %81 : vector<8x768xf32>
    %cst_29 = arith.constant 0.000000e+00 : f32
    %83 = vector.broadcast %cst_29 : f32 to vector<8x768xf32>
    %84 = arith.maximumf %82, %83 : vector<8x768xf32>
    %c0_30 = arith.constant 0 : index
    %c0_31 = arith.constant 0 : index
    %85 = vector.load %arg9[%c0_30, %c0_31] : memref<8x768xf32, #tpu.memory_space<vmem>>, vector<8x768xf32>
    tpu.vector_store %arg9[%c0_30, %c0_31], %84 {strides = array<i32>} : memref<8x768xf32, #tpu.memory_space<vmem>>, vector<8x768xf32>,
    return
  }
}

</mosaic_0001>

<llo_original>
// kernel: tile.9
$region0: #{tile.9}
  #allocation0 [shape = 's32[1]{0}', space=sflag, size = 0x4, scoped, tag = 'scoped memory for tile.9']
  %s0 = inlined_call_operand.vmem [shape: f32[384], index: 0, kind: input, shape index: {}]
  %s1 = inlined_call_operand.vmem [shape: f32[2,384], index: 1, kind: output, shape index: {}]
  // Predicated region
  $region2: #{tile.9} parent=0 // pred_check
    _
  $region3: #{tile.9} parent=0 // pred_check_branch
    %3 = sbr.rel (0) target = $region5
  $region4: #{tile.9} parent=0 // pred_region
    _
  $region5: #{tile.9} parent=0 // pred_fallthru
    _
  %v4 = vld [vmem:[%s0] ss:$0 sm:$0xff]
  %5 = vst [vmem:[%s1] sm:$0x3] %v4
  %s6 = scalar_lea.vmem %s0, 1
  %v7 = vld [vmem:[%s6] ss:$0 sm:$0xff]
  %s8 = scalar_lea.vmem %s1, 2
  %9 = vst [vmem:[%s8] sm:$0x3] %v7
  %s10 = scalar_lea.vmem %s0, 2
  %v11 = vld [vmem:[%s10] ss:$0 sm:$0xff]
  %s12 = scalar_lea.vmem %s1, 4
  %13 = vst [vmem:[%s12] sm:$0x3] %v11

// kernel: tile.10
$region0: #{tile.10}
  %s0 = inlined_call_operand.vmem [shape: f32[2,384], index: 0, kind: input, shape index: {}]
  %s1 = inlined_call_operand.vmem [shape: f32[768], index: 1, kind: output, shape index: {}]
  $region1: #{tile.10} parent=0
    #allocation0 [shape = 'u8[12288]{0}', space=vmem, size = 0x3000, scoped, tag = 'scoped mem for input reshape']
    %s3 = sshll.u32 1, 2
    %s4 = ssub.s32 %s3, 1
    %s5 = smul.addr 2, 2
    %s6 = scalar_lea.vmem %s0, %s5
    %v7 = vld [vmem:[%s6] sm:%s4]
    %s8 = scalar_lea.vmem [#allocation0], 16
    %9 = vst [vmem:[%s8] sm:%s4] %v7
    %s10 = scalar_lea.vmem %s0, 2
    %v11 = vld [vmem:[%s10] sm:%s4]
    %s12 = scalar_lea.vmem [#allocation0], 8
    %13 = vst [vmem:[%s12] sm:%s4] %v11
    %v14 = vld [vmem:[%s0] sm:%s4]
    %15 = vst [vmem:[#allocation0] sm:%s4] %v14
    %v16 = vld [vmem:[#allocation0] sm:$0x3]
    %17 = vst [vmem:[%s1] ss:$3 sm:$0x3] %v16
    %s18 = scalar_lea.vmem [#allocation0], 8
    %v19 = vld [vmem:[%s18] sm:$0x3]
    %s20 = scalar_lea.vmem %s1, 1
    %21 = vst [vmem:[%s20] ss:$3 sm:$0x3] %v19
    %s22 = scalar_lea.vmem [#allocation0], 16
    %v23 = vld [vmem:[%s22] sm:$0x3]
    %s24 = scalar_lea.vmem %s1, 2
    %25 = vst [vmem:[%s24] ss:$3 sm:$0x3] %v23

// kernel: basic_block_pallas.1
$region0: #{basic_block_pallas.1}
  #allocation0 [shape = 'u32[]', space=smem, size = 0x4, offset = 0x4, fixed_abs, tag = 'smem constant byte address 0x4 - core index']
  #allocation1 [shape = 'u32[144,128]{1,0:T(1,128)}', space=vmem, size = 0x12000, scoped, tag = 'internal scratch']
  %s0 = inlined_call_operand.vmem [shape: f32[8,896], index: 0, kind: input, shape index: {}]
  %s1 = inlined_call_operand.vmem [shape: f32[1,832], index: 1, kind: input, shape index: {}]
  %s2 = inlined_call_operand.vmem [shape: f32[1,768], index: 2, kind: input, shape index: {}]
  %s3 = inlined_call_operand.vmem [shape: f32[8,72], index: 3, kind: input, shape index: {}]
  %s4 = inlined_call_operand.vmem [shape: f32[8,1], index: 4, kind: input, shape index: {}]
  %s5 = inlined_call_operand.vmem [shape: f32[8,1], index: 5, kind: input, shape index: {}]
  %s6 = inlined_call_operand.vmem [shape: f32[8,72], index: 6, kind: input, shape index: {}]
  %s7 = inlined_call_operand.vmem [shape: f32[8,1], index: 7, kind: input, shape index: {}]
  %s8 = inlined_call_operand.vmem [shape: f32[8,1], index: 8, kind: input, shape index: {}]
  %s9 = inlined_call_operand.vmem [shape: f32[8,768], index: 9, kind: output, shape index: {}]
  %s10 = sld [smem:[#allocation0]]
  $region46: #{basic_block_pallas.1} parent=0
    _
  %s12 = ssub.s32 1, %s10
  %s13 = scalar_select 0, %s12, %s10
  // Predicated region
  $region2: #{basic_block_pallas.1} parent=0 // pred_check
    _
  $region3: #{basic_block_pallas.1} parent=0 // pred_check_branch
    %15 = sbr.rel (0) target = $region5
  $region4: #{basic_block_pallas.1} parent=0 // pred_region
    _
  $region5: #{basic_block_pallas.1} parent=0 // pred_fallthru
    _
  // Predicated region
  $region6: #{basic_block_pallas.1} parent=0 // pred_check
    _
  $region7: #{basic_block_pallas.1} parent=0 // pred_check_branch
    %17 = sbr.rel (0) target = $region9
  $region8: #{basic_block_pallas.1} parent=0 // pred_region
    _
  $region9: #{basic_block_pallas.1} parent=0 // pred_fallthru
    _
  // Predicated region
  $region10: #{basic_block_pallas.1} parent=0 // pred_check
    _
  $region11: #{basic_block_pallas.1} parent=0 // pred_check_branch
    %19 = sbr.rel (0) target = $region13
  $region12: #{basic_block_pallas.1} parent=0 // pred_region
    _
  $region13: #{basic_block_pallas.1} parent=0 // pred_fallthru
    _
  // Predicated region
  $region14: #{basic_block_pallas.1} parent=0 // pred_check
    _
  $region15: #{basic_block_pallas.1} parent=0 // pred_check_branch
    %21 = sbr.rel (0) target = $region17
  $region16: #{basic_block_pallas.1} parent=0 // pred_region
    _
  $region17: #{basic_block_pallas.1} parent=0 // pred_fallthru
    _
  // Predicated region
  $region18: #{basic_block_pallas.1} parent=0 // pred_check
    _
  $region19: #{basic_block_pallas.1} parent=0 // pred_check_branch
    %23 = sbr.rel (0) target = $region21
  $region20: #{basic_block_pallas.1} parent=0 // pred_region
    _
  $region21: #{basic_block_pallas.1} parent=0 // pred_fallthru
    _
  // Predicated region
  $region22: #{basic_block_pallas.1} parent=0 // pred_check
    _
  $region23: #{basic_block_pallas.1} parent=0 // pred_check_branch
    %25 = sbr.rel (0) target = $region25
  $region24: #{basic_block_pallas.1} parent=0 // pred_region
    _
  $region25: #{basic_block_pallas.1} parent=0 // pred_fallthru
    _
  // Predicated region
  $region26: #{basic_block_pallas.1} parent=0 // pred_check
    _
  $region27: #{basic_block_pallas.1} parent=0 // pred_check_branch
    %27 = sbr.rel (0) target = $region29
  $region28: #{basic_block_pallas.1} parent=0 // pred_region
    _
  $region29: #{basic_block_pallas.1} parent=0 // pred_fallthru
    _
  // Predicated region
  $region30: #{basic_block_pallas.1} parent=0 // pred_check
    _
  $region31: #{basic_block_pallas.1} parent=0 // pred_check_branch
    %29 = sbr.rel (0) target = $region33
  $region32: #{basic_block_pallas.1} parent=0 // pred_region
    _
  $region33: #{basic_block_pallas.1} parent=0 // pred_fallthru
    _
  // Predicated region
  $region34: #{basic_block_pallas.1} parent=0 // pred_check
    _
  $region35: #{basic_block_pallas.1} parent=0 // pred_check_branch
    %31 = sbr.rel (0) target = $region37
  $region36: #{basic_block_pallas.1} parent=0 // pred_region
    _
  $region37: #{basic_block_pallas.1} parent=0 // pred_fallthru
    _
  %v32 = vld [vmem:[%s0] sm:$0xff]
  %v33 = vld [vmem:[%s0 + $0x8] sm:$0xff]
  %v34 = vld [vmem:[%s0 + $0x10] sm:$0xff]
  %v35 = vld [vmem:[%s0 + $0x18] sm:$0xff]
  %v36 = vld [vmem:[%s0 + $0x20] sm:$0xff]
  %v37 = vld [vmem:[%s0 + $0x28] sm:$0xff]
  %v38 = vld [vmem:[%s0 + $0x30] sm:$0xff]
  %v39 = vld [vmem:[%s1] sm:$0x7f]
  %v40 = vld [vmem:[%s2] sm:$0x3f]
  %v41 = vld [vmem:[%s3] sm:$0xff]
  %49 = vrot.lane.b32.xlu0 %v32, 127
  %v50 = vpop.permute.xlu0 %49
  %51 = vrot.lane.b32.xlu0 %v33, 127
  %v52 = vpop.permute.xlu0 %51
  %53 = vrot.lane.b32.xlu0 %v34, 127
  %v54 = vpop.permute.xlu0 %53
  %55 = vrot.lane.b32.xlu0 %v35, 127
  %v56 = vpop.permute.xlu0 %55
  %57 = vrot.lane.b32.xlu0 %v36, 127
  %v58 = vpop.permute.xlu0 %57
  %59 = vrot.lane.b32.xlu0 %v37, 127
  %v60 = vpop.permute.xlu0 %59
  %61 = vrot.lane.b32.xlu0 %v38, 127
  %v62 = vpop.permute.xlu0 %61
  %vm63 = vcmask 1039360
  %v64 = vsel %vm63, %v50, %v52
  %v65 = vsel %vm63, %v52, %v54
  %v66 = vsel %vm63, %v54, %v56
  %v67 = vsel %vm63, %v56, %v58
  %v68 = vsel %vm63, %v58, %v60
  %v69 = vsel %vm63, %v60, %v62
  %70 = vrot.lane.b32.xlu0 %v32, 126
  %v71 = vpop.permute.xlu0 %70
  %72 = vrot.lane.b32.xlu0 %v33, 126
  %v73 = vpop.permute.xlu0 %72
  %74 = vrot.lane.b32.xlu0 %v34, 126
  %v75 = vpop.permute.xlu0 %74
  %76 = vrot.lane.b32.xlu0 %v35, 126
  %v77 = vpop.permute.xlu0 %76
  %78 = vrot.lane.b32.xlu0 %v36, 126
  %v79 = vpop.permute.xlu0 %78
  %80 = vrot.lane.b32.xlu0 %v37, 126
  %v81 = vpop.permute.xlu0 %80
  %82 = vrot.lane.b32.xlu0 %v38, 126
  %v83 = vpop.permute.xlu0 %82
  %vm84 = vcmask 1031168
  %v85 = vsel %vm84, %v71, %v73
  %v86 = vsel %vm84, %v73, %v75
  %v87 = vsel %vm84, %v75, %v77
  %v88 = vsel %vm84, %v77, %v79
  %v89 = vsel %vm84, %v79, %v81
  %v90 = vsel %vm84, %v81, %v83
  %91 = vrot.lane.b32.xlu0 %v32, 110
  %v92 = vpop.permute.xlu0 %91
  %93 = vrot.lane.b32.xlu0 %v33, 110
  %v94 = vpop.permute.xlu0 %93
  %95 = vrot.lane.b32.xlu0 %v34, 110
  %v96 = vpop.permute.xlu0 %95
  %97 = vrot.lane.b32.xlu0 %v35, 110
  %v98 = vpop.permute.xlu0 %97
  %99 = vrot.lane.b32.xlu0 %v36, 110
  %v100 = vpop.permute.xlu0 %99
  %101 = vrot.lane.b32.xlu0 %v37, 110
  %v102 = vpop.permute.xlu0 %101
  %103 = vrot.lane.b32.xlu0 %v38, 110
  %v104 = vpop.permute.xlu0 %103
  %vm105 = vcmask 900096
  %v106 = vsel %vm105, %v92, %v94
  %v107 = vsel %vm105, %v94, %v96
  %v108 = vsel %vm105, %v96, %v98
  %v109 = vsel %vm105, %v98, %v100
  %v110 = vsel %vm105, %v100, %v102
  %v111 = vsel %vm105, %v102, %v104
  %112 = vrot.lane.b32.xlu0 %v32, 109
  %v113 = vpop.permute.xlu0 %112
  %114 = vrot.lane.b32.xlu0 %v33, 109
  %v115 = vpop.permute.xlu0 %114
  %116 = vrot.lane.b32.xlu0 %v34, 109
  %v117 = vpop.permute.xlu0 %116
  %118 = vrot.lane.b32.xlu0 %v35, 109
  %v119 = vpop.permute.xlu0 %118
  %120 = vrot.lane.b32.xlu0 %v36, 109
  %v121 = vpop.permute.xlu0 %120
  %122 = vrot.lane.b32.xlu0 %v37, 109
  %v123 = vpop.permute.xlu0 %122
  %124 = vrot.lane.b32.xlu0 %v38, 109
  %v125 = vpop.permute.xlu0 %124
  %vm126 = vcmask 891904
  %v127 = vsel %vm126, %v113, %v115
  %v128 = vsel %vm126, %v115, %v117
  %v129 = vsel %vm126, %v117, %v119
  %v130 = vsel %vm126, %v119, %v121
  %v131 = vsel %vm126, %v121, %v123
  %v132 = vsel %vm126, %v123, %v125
  %133 = vrot.lane.b32.xlu0 %v32, 108
  %v134 = vpop.permute.xlu0 %133
  %135 = vrot.lane.b32.xlu0 %v33, 108
  %v136 = vpop.permute.xlu0 %135
  %137 = vrot.lane.b32.xlu0 %v34, 108
  %v138 = vpop.permute.xlu0 %137
  %139 = vrot.lane.b32.xlu0 %v35, 108
  %v140 = vpop.permute.xlu0 %139
  %141 = vrot.lane.b32.xlu0 %v36, 108
  %v142 = vpop.permute.xlu0 %141
  %143 = vrot.lane.b32.xlu0 %v37, 108
  %v144 = vpop.permute.xlu0 %143
  %145 = vrot.lane.b32.xlu0 %v38, 108
  %v146 = vpop.permute.xlu0 %145
  %vm147 = vcmask 883712
  %v148 = vsel %vm147, %v134, %v136
  %v149 = vsel %vm147, %v136, %v138
  %v150 = vsel %vm147, %v138, %v140
  %v151 = vsel %vm147, %v140, %v142
  %v152 = vsel %vm147, %v142, %v144
  %v153 = vsel %vm147, %v144, %v146
  %154 = vrot.lane.b32.xlu0 %v32, 92
  %v155 = vpop.permute.xlu0 %154
  %156 = vrot.lane.b32.xlu0 %v33, 92
  %v157 = vpop.permute.xlu0 %156
  %158 = vrot.lane.b32.xlu0 %v34, 92
  %v159 = vpop.permute.xlu0 %158
  %160 = vrot.lane.b32.xlu0 %v35, 92
  %v161 = vpop.permute.xlu0 %160
  %162 = vrot.lane.b32.xlu0 %v36, 92
  %v163 = vpop.permute.xlu0 %162
  %164 = vrot.lane.b32.xlu0 %v37, 92
  %v165 = vpop.permute.xlu0 %164
  %166 = vrot.lane.b32.xlu0 %v38, 92
  %v167 = vpop.permute.xlu0 %166
  %vm168 = vcmask 752640
  %v169 = vsel %vm168, %v155, %v157
  %v170 = vsel %vm168, %v157, %v159
  %v171 = vsel %vm168, %v159, %v161
  %v172 = vsel %vm168, %v161, %v163
  %v173 = vsel %vm168, %v163, %v165
  %v174 = vsel %vm168, %v165, %v167
  %175 = vrot.lane.b32.xlu0 %v32, 91
  %v176 = vpop.permute.xlu0 %175
  %177 = vrot.lane.b32.xlu0 %v33, 91
  %v178 = vpop.permute.xlu0 %177
  %179 = vrot.lane.b32.xlu0 %v34, 91
  %v180 = vpop.permute.xlu0 %179
  %181 = vrot.lane.b32.xlu0 %v35, 91
  %v182 = vpop.permute.xlu0 %181
  %183 = vrot.lane.b32.xlu0 %v36, 91
  %v184 = vpop.permute.xlu0 %183
  %185 = vrot.lane.b32.xlu0 %v37, 91
  %v186 = vpop.permute.xlu0 %185
  %187 = vrot.lane.b32.xlu0 %v38, 91
  %v188 = vpop.permute.xlu0 %187
  %vm189 = vcmask 744448
  %v190 = vsel %vm189, %v176, %v178
  %v191 = vsel %vm189, %v178, %v180
  %v192 = vsel %vm189, %v180, %v182
  %v193 = vsel %vm189, %v182, %v184
  %v194 = vsel %vm189, %v184, %v186
  %v195 = vsel %vm189, %v186, %v188
  %196 = vrot.lane.b32.xlu0 %v32, 90
  %v197 = vpop.permute.xlu0 %196
  %198 = vrot.lane.b32.xlu0 %v33, 90
  %v199 = vpop.permute.xlu0 %198
  %200 = vrot.lane.b32.xlu0 %v34, 90
  %v201 = vpop.permute.xlu0 %200
  %202 = vrot.lane.b32.xlu0 %v35, 90
  %v203 = vpop.permute.xlu0 %202
  %204 = vrot.lane.b32.xlu0 %v36, 90
  %v205 = vpop.permute.xlu0 %204
  %206 = vrot.lane.b32.xlu0 %v37, 90
  %v207 = vpop.permute.xlu0 %206
  %208 = vrot.lane.b32.xlu0 %v38, 90
  %v209 = vpop.permute.xlu0 %208
  %vm210 = vcmask 736256
  %v211 = vsel %vm210, %v197, %v199
  %v212 = vsel %vm210, %v199, %v201
  %v213 = vsel %vm210, %v201, %v203
  %v214 = vsel %vm210, %v203, %v205
  %v215 = vsel %vm210, %v205, %v207
  %v216 = vsel %vm210, %v207, %v209
  %217 = vrot.lane.b32.xlu0 %v32, 115
  %v218 = vpop.permute.xlu0 %217
  %219 = vrot.lane.b32.xlu0 %v33, 115
  %v220 = vpop.permute.xlu0 %219
  %221 = vrot.lane.b32.xlu0 %v34, 115
  %v222 = vpop.permute.xlu0 %221
  %223 = vrot.lane.b32.xlu0 %v35, 115
  %v224 = vpop.permute.xlu0 %223
  %225 = vrot.lane.b32.xlu0 %v36, 115
  %v226 = vpop.permute.xlu0 %225
  %227 = vrot.lane.b32.xlu0 %v37, 115
  %v228 = vpop.permute.xlu0 %227
  %229 = vrot.lane.b32.xlu0 %v38, 115
  %v230 = vpop.permute.xlu0 %229
  %231 = vrot.lane.b32.xlu0 %v64, 115
  %v232 = vpop.permute.xlu0 %231
  %233 = vrot.lane.b32.xlu0 %v65, 115
  %v234 = vpop.permute.xlu0 %233
  %235 = vrot.lane.b32.xlu0 %v66, 115
  %v236 = vpop.permute.xlu0 %235
  %237 = vrot.lane.b32.xlu0 %v67, 115
  %v238 = vpop.permute.xlu0 %237
  %239 = vrot.lane.b32.xlu0 %v68, 115
  %v240 = vpop.permute.xlu0 %239
  %241 = vrot.lane.b32.xlu0 %v69, 115
  %v242 = vpop.permute.xlu0 %241
  %243 = vrot.lane.b32.xlu0 %v62, 115
  %v244 = vpop.permute.xlu0 %243
  %245 = vrot.lane.b32.xlu0 %v85, 115
  %v246 = vpop.permute.xlu0 %245
  %247 = vrot.lane.b32.xlu0 %v86, 115
  %v248 = vpop.permute.xlu0 %247
  %249 = vrot.lane.b32.xlu0 %v87, 115
  %v250 = vpop.permute.xlu0 %249
  %251 = vrot.lane.b32.xlu0 %v88, 115
  %v252 = vpop.permute.xlu0 %251
  %253 = vrot.lane.b32.xlu0 %v89, 115
  %v254 = vpop.permute.xlu0 %253
  %255 = vrot.lane.b32.xlu0 %v90, 115
  %v256 = vpop.permute.xlu0 %255
  %257 = vrot.lane.b32.xlu0 %v83, 115
  %v258 = vpop.permute.xlu0 %257
  %259 = vrot.lane.b32.xlu0 %v106, 115
  %v260 = vpop.permute.xlu0 %259
  %261 = vrot.lane.b32.xlu0 %v107, 115
  %v262 = vpop.permute.xlu0 %261
  %263 = vrot.lane.b32.xlu0 %v108, 115
  %v264 = vpop.permute.xlu0 %263
  %265 = vrot.lane.b32.xlu0 %v109, 115
  %v266 = vpop.permute.xlu0 %265
  %267 = vrot.lane.b32.xlu0 %v110, 115
  %v268 = vpop.permute.xlu0 %267
  %269 = vrot.lane.b32.xlu0 %v111, 115
  %v270 = vpop.permute.xlu0 %269
  %271 = vrot.lane.b32.xlu0 %v104, 115
  %v272 = vpop.permute.xlu0 %271
  %273 = vrot.lane.b32.xlu0 %v127, 115
  %v274 = vpop.permute.xlu0 %273
  %275 = vrot.lane.b32.xlu0 %v128, 115
  %v276 = vpop.permute.xlu0 %275
  %277 = vrot.lane.b32.xlu0 %v129, 115
  %v278 = vpop.permute.xlu0 %277
  %279 = vrot.lane.b32.xlu0 %v130, 115
  %v280 = vpop.permute.xlu0 %279
  %281 = vrot.lane.b32.xlu0 %v131, 115
  %v282 = vpop.permute.xlu0 %281
  %283 = vrot.lane.b32.xlu0 %v132, 115
  %v284 = vpop.permute.xlu0 %283
  %285 = vrot.lane.b32.xlu0 %v125, 115
  %v286 = vpop.permute.xlu0 %285
  %287 = vrot.lane.b32.xlu0 %v148, 115
  %v288 = vpop.permute.xlu0 %287
  %289 = vrot.lane.b32.xlu0 %v149, 115
  %v290 = vpop.permute.xlu0 %289
  %291 = vrot.lane.b32.xlu0 %v150, 115
  %v292 = vpop.permute.xlu0 %291
  %293 = vrot.lane.b32.xlu0 %v151, 115
  %v294 = vpop.permute.xlu0 %293
  %295 = vrot.lane.b32.xlu0 %v152, 115
  %v296 = vpop.permute.xlu0 %295
  %297 = vrot.lane.b32.xlu0 %v153, 115
  %v298 = vpop.permute.xlu0 %297
  %299 = vrot.lane.b32.xlu0 %v146, 115
  %v300 = vpop.permute.xlu0 %299
  %301 = vrot.lane.b32.xlu0 %v169, 115
  %v302 = vpop.permute.xlu0 %301
  %303 = vrot.lane.b32.xlu0 %v170, 115
  %v304 = vpop.permute.xlu0 %303
  %305 = vrot.lane.b32.xlu0 %v171, 115
  %v306 = vpop.permute.xlu0 %305
  %307 = vrot.lane.b32.xlu0 %v172, 115
  %v308 = vpop.permute.xlu0 %307
  %309 = vrot.lane.b32.xlu0 %v173, 115
  %v310 = vpop.permute.xlu0 %309
  %311 = vrot.lane.b32.xlu0 %v174, 115
  %v312 = vpop.permute.xlu0 %311
  %313 = vrot.lane.b32.xlu0 %v167, 115
  %v314 = vpop.permute.xlu0 %313
  %315 = vrot.lane.b32.xlu0 %v190, 115
  %v316 = vpop.permute.xlu0 %315
  %317 = vrot.lane.b32.xlu0 %v191, 115
  %v318 = vpop.permute.xlu0 %317
  %319 = vrot.lane.b32.xlu0 %v192, 115
  %v320 = vpop.permute.xlu0 %319
  %321 = vrot.lane.b32.xlu0 %v193, 115
  %v322 = vpop.permute.xlu0 %321
  %323 = vrot.lane.b32.xlu0 %v194, 115
  %v324 = vpop.permute.xlu0 %323
  %325 = vrot.lane.b32.xlu0 %v195, 115
  %v326 = vpop.permute.xlu0 %325
  %327 = vrot.lane.b32.xlu0 %v188, 115
  %v328 = vpop.permute.xlu0 %327
  %329 = vrot.lane.b32.xlu0 %v211, 115
  %v330 = vpop.permute.xlu0 %329
  %331 = vrot.lane.b32.xlu0 %v212, 115
  %v332 = vpop.permute.xlu0 %331
  %333 = vrot.lane.b32.xlu0 %v213, 115
  %v334 = vpop.permute.xlu0 %333
  %335 = vrot.lane.b32.xlu0 %v214, 115
  %v336 = vpop.permute.xlu0 %335
  %337 = vrot.lane.b32.xlu0 %v215, 115
  %v338 = vpop.permute.xlu0 %337
  %339 = vrot.lane.b32.xlu0 %v216, 115
  %v340 = vpop.permute.xlu0 %339
  %341 = vrot.lane.b32.xlu0 %v209, 115
  %v342 = vpop.permute.xlu0 %341
  %vm343 = vcmask 941056
  %v344 = vsel %vm343, %v218, %v220
  %v345 = vsel %vm343, %v220, %v222
  %v346 = vsel %vm343, %v222, %v224
  %v347 = vsel %vm343, %v224, %v226
  %v348 = vsel %vm343, %v226, %v228
  %v349 = vsel %vm343, %v228, %v230
  %v350 = vsel %vm343, %v232, %v234
  %v351 = vsel %vm343, %v234, %v236
  %v352 = vsel %vm343, %v236, %v238
  %v353 = vsel %vm343, %v238, %v240
  %v354 = vsel %vm343, %v240, %v242
  %v355 = vsel %vm343, %v242, %v244
  %v356 = vsel %vm343, %v246, %v248
  %v357 = vsel %vm343, %v248, %v250
  %v358 = vsel %vm343, %v250, %v252
  %v359 = vsel %vm343, %v252, %v254
  %v360 = vsel %vm343, %v254, %v256
  %v361 = vsel %vm343, %v256, %v258
  %v362 = vsel %vm343, %v260, %v262
  %v363 = vsel %vm343, %v262, %v264
  %v364 = vsel %vm343, %v264, %v266
  %v365 = vsel %vm343, %v266, %v268
  %v366 = vsel %vm343, %v268, %v270
  %v367 = vsel %vm343, %v270, %v272
  %v368 = vsel %vm343, %v274, %v276
  %v369 = vsel %vm343, %v276, %v278
  %v370 = vsel %vm343, %v278, %v280
  %v371 = vsel %vm343, %v280, %v282
  %v372 = vsel %vm343, %v282, %v284
  %v373 = vsel %vm343, %v284, %v286
  %v374 = vsel %vm343, %v288, %v290
  %v375 = vsel %vm343, %v290, %v292
  %v376 = vsel %vm343, %v292, %v294
  %v377 = vsel %vm343, %v294, %v296
  %v378 = vsel %vm343, %v296, %v298
  %v379 = vsel %vm343, %v298, %v300
  %v380 = vsel %vm343, %v302, %v304
  %v381 = vsel %vm343, %v304, %v306
  %v382 = vsel %vm343, %v306, %v308
  %v383 = vsel %vm343, %v308, %v310
  %v384 = vsel %vm343, %v310, %v312
  %v385 = vsel %vm343, %v312, %v314
  %v386 = vsel %vm343, %v316, %v318
  %v387 = vsel %vm343, %v318, %v320
  %v388 = vsel %vm343, %v320, %v322
  %v389 = vsel %vm343, %v322, %v324
  %v390 = vsel %vm343, %v324, %v326
  %v391 = vsel %vm343, %v326, %v328
  %v392 = vsel %vm343, %v330, %v332
  %v393 = vsel %vm343, %v332, %v334
  %v394 = vsel %vm343, %v334, %v336
  %v395 = vsel %vm343, %v336, %v338
  %v396 = vsel %vm343, %v338, %v340
  %v397 = vsel %vm343, %v340, %v342
  %vm461 = vcmask 588800
  %v463 = vsel %vm461, %v41, 0
  %465 = vmatprep.subr.mxu0 0.0
  %466 = vmatpush1.msra.mxu0 0.0
  %467 = vmatprep.subr.mxu0 0.0
  %468 = vmatpush1.msra.mxu0 0.0
  %469 = vmatprep.subr.mxu0 0.0
  %470 = vmatpush1.msra.mxu0 0.0
  %471 = vmatprep.subr.mxu0 0.0
  %472 = vmatpush1.msra.mxu0 0.0
  %473 = vmatprep.subr.mxu0 0.0
  %474 = vmatpush1.msra.mxu0 0.0
  %475 = vmatprep.subr.mxu0 0.0
  %476 = vmatpush1.msra.mxu0 0.0
  %477 = vmatprep.subr.mxu0 0.0
  %478 = vmatpush1.msra.mxu0 0.0
  %479 = vmatprep.subr.mxu0 %v393
  %480 = vmatpush1.msra.mxu0 %v392
  %481 = vmatprep.subr.mxu0 %v387
  %482 = vmatpush1.msra.mxu0 %v386
  %483 = vmatprep.subr.mxu0 %v381
  %484 = vmatpush1.msra.mxu0 %v380
  %485 = vmatprep.subr.mxu0 %v375
  %486 = vmatpush1.msra.mxu0 %v374
  %487 = vmatprep.subr.mxu0 %v369
  %488 = vmatpush1.msra.mxu0 %v368
  %489 = vmatprep.subr.mxu0 %v363
  %490 = vmatpush1.msra.mxu0 %v362
  %491 = vmatprep.subr.mxu0 %v357
  %492 = vmatpush1.msra.mxu0 %v356
  %493 = vmatprep.subr.mxu0 %v351
  %494 = vmatpush1.msra.mxu0 %v350
  %495 = vmatprep.subr.mxu0 %v345
  %496 = vmatpush1.msra.mxu0 %v344
  %497 = vmatprep.subr.mxu0 0.0
  %498 = vmatpush2.msra.mxu0 0.0
  %499 = vmatprep.subr.mxu0 0.0
  %500 = vmatpush2.msra.mxu0 0.0
  %501 = vmatprep.subr.mxu0 0.0
  %502 = vmatpush2.msra.mxu0 0.0
  %503 = vmatprep.subr.mxu0 0.0
  %504 = vmatpush2.msra.mxu0 0.0
  %505 = vmatprep.subr.mxu0 0.0
  %506 = vmatpush2.msra.mxu0 0.0
  %507 = vmatprep.subr.mxu0 0.0
  %508 = vmatpush2.msra.mxu0 0.0
  %509 = vmatprep.subr.mxu0 0.0
  %510 = vmatpush2.msra.mxu0 0.0
  %511 = vmatprep.subr.mxu0 0.0
  %512 = vmatpush2.msra.mxu0 0.0
  %513 = vmatprep.subr.mxu0 0.0
  %514 = vmatpush2.msra.mxu0 0.0
  %515 = vmatprep.subr.mxu0 0.0
  %516 = vmatpush2.msra.mxu0 0.0
  %517 = vmatprep.subr.mxu0 0.0
  %518 = vmatpush2.msra.mxu0 0.0
  %519 = vmatprep.subr.mxu0 0.0
  %520 = vmatpush2.msra.mxu0 0.0
  %521 = vmatprep.subr.mxu0 0.0
  %522 = vmatpush2.msra.mxu0 0.0
  %523 = vmatprep.subr.mxu0 0.0
  %524 = vmatpush2.msra.mxu0 0.0
  %525 = vmatprep.subr.mxu0 0.0
  %526 = vmatpush2.msra.mxu0 0.0
  %527 = vmatprep.subr.mxu0 0.0
  %528 = vmatpush2.msra.mxu0 0.0
  %529 = vmatprep.mubr.f32.mxu0 0.0
  %530 = vmatmul.mubr.f32.gmra.mxu0 %v463
  %v531 = vpop.f32.mrf.mxu0
  %v532 = vadd.f32 0.0, %v531
  %v533 = vpop.f32.mrf.mxu0
  %v534 = vadd.f32 0.0, %v533
  %535 = vdwg.mxu0
  %536 = vmatprep.subr.mxu0 0.0
  %537 = vmatpush1.msra.mxu0 0.0
  %538 = vmatprep.subr.mxu0 0.0
  %539 = vmatpush1.msra.mxu0 0.0
  %540 = vmatprep.subr.mxu0 0.0
  %541 = vmatpush1.msra.mxu0 0.0
  %542 = vmatprep.subr.mxu0 0.0
  %543 = vmatpush1.msra.mxu0 0.0
  %544 = vmatprep.subr.mxu0 0.0
  %545 = vmatpush1.msra.mxu0 0.0
  %546 = vmatprep.subr.mxu0 0.0
  %547 = vmatpush1.msra.mxu0 0.0
  %548 = vmatprep.subr.mxu0 0.0
  %549 = vmatpush1.msra.mxu0 0.0
  %550 = vmatprep.subr.mxu0 %v395
  %551 = vmatpush1.msra.mxu0 %v394
  %552 = vmatprep.subr.mxu0 %v389
  %553 = vmatpush1.msra.mxu0 %v388
  %554 = vmatprep.subr.mxu0 %v383
  %555 = vmatpush1.msra.mxu0 %v382
  %556 = vmatprep.subr.mxu0 %v377
  %557 = vmatpush1.msra.mxu0 %v376
  %558 = vmatprep.subr.mxu0 %v371
  %559 = vmatpush1.msra.mxu0 %v370
  %560 = vmatprep.subr.mxu0 %v365
  %561 = vmatpush1.msra.mxu0 %v364
  %562 = vmatprep.subr.mxu0 %v359
  %563 = vmatpush1.msra.mxu0 %v358
  %564 = vmatprep.subr.mxu0 %v353
  %565 = vmatpush1.msra.mxu0 %v352
  %566 = vmatprep.subr.mxu0 %v347
  %567 = vmatpush1.msra.mxu0 %v346
  %568 = vmatprep.subr.mxu0 0.0
  %569 = vmatpush2.msra.mxu0 0.0
  %570 = vmatprep.subr.mxu0 0.0
  %571 = vmatpush2.msra.mxu0 0.0
  %572 = vmatprep.subr.mxu0 0.0
  %573 = vmatpush2.msra.mxu0 0.0
  %574 = vmatprep.subr.mxu0 0.0
  %575 = vmatpush2.msra.mxu0 0.0
  %576 = vmatprep.subr.mxu0 0.0
  %577 = vmatpush2.msra.mxu0 0.0
  %578 = vmatprep.subr.mxu0 0.0
  %579 = vmatpush2.msra.mxu0 0.0
  %580 = vmatprep.subr.mxu0 0.0
  %581 = vmatpush2.msra.mxu0 0.0
  %582 = vmatprep.subr.mxu0 0.0
  %583 = vmatpush2.msra.mxu0 0.0
  %584 = vmatprep.subr.mxu0 0.0
  %585 = vmatpush2.msra.mxu0 0.0
  %586 = vmatprep.subr.mxu0 0.0
  %587 = vmatpush2.msra.mxu0 0.0
  %588 = vmatprep.subr.mxu0 0.0
  %589 = vmatpush2.msra.mxu0 0.0
  %590 = vmatprep.subr.mxu0 0.0
  %591 = vmatpush2.msra.mxu0 0.0
  %592 = vmatprep.subr.mxu0 0.0
  %593 = vmatpush2.msra.mxu0 0.0
  %594 = vmatprep.subr.mxu0 0.0
  %595 = vmatpush2.msra.mxu0 0.0
  %596 = vmatprep.subr.mxu0 0.0
  %597 = vmatpush2.msra.mxu0 0.0
  %598 = vmatprep.subr.mxu0 0.0
  %599 = vmatpush2.msra.mxu0 0.0
  %600 = vmatprep.mubr.f32.mxu0 0.0
  %601 = vmatmul.mubr.f32.gmra.mxu0 %v463
  %v602 = vpop.f32.mrf.mxu0
  %v603 = vadd.f32 0.0, %v602
  %v604 = vpop.f32.mrf.mxu0
  %v605 = vadd.f32 0.0, %v604
  %606 = vdwg.mxu0
  %607 = vmatprep.subr.mxu0 0.0
  %608 = vmatpush1.msra.mxu0 0.0
  %609 = vmatprep.subr.mxu0 0.0
  %610 = vmatpush1.msra.mxu0 0.0
  %611 = vmatprep.subr.mxu0 0.0
  %612 = vmatpush1.msra.mxu0 0.0
  %613 = vmatprep.subr.mxu0 0.0
  %614 = vmatpush1.msra.mxu0 0.0
  %615 = vmatprep.subr.mxu0 0.0
  %616 = vmatpush1.msra.mxu0 0.0
  %617 = vmatprep.subr.mxu0 0.0
  %618 = vmatpush1.msra.mxu0 0.0
  %619 = vmatprep.subr.mxu0 0.0
  %620 = vmatpush1.msra.mxu0 0.0
  %621 = vmatprep.subr.mxu0 %v397
  %622 = vmatpush1.msra.mxu0 %v396
  %623 = vmatprep.subr.mxu0 %v391
  %624 = vmatpush1.msra.mxu0 %v390
  %625 = vmatprep.subr.mxu0 %v385
  %626 = vmatpush1.msra.mxu0 %v384
  %627 = vmatprep.subr.mxu0 %v379
  %628 = vmatpush1.msra.mxu0 %v378
  %629 = vmatprep.subr.mxu0 %v373
  %630 = vmatpush1.msra.mxu0 %v372
  %631 = vmatprep.subr.mxu0 %v367
  %632 = vmatpush1.msra.mxu0 %v366
  %633 = vmatprep.subr.mxu0 %v361
  %634 = vmatpush1.msra.mxu0 %v360
  %635 = vmatprep.subr.mxu0 %v355
  %636 = vmatpush1.msra.mxu0 %v354
  %637 = vmatprep.subr.mxu0 %v349
  %638 = vmatpush1.msra.mxu0 %v348
  %639 = vmatprep.subr.mxu0 0.0
  %640 = vmatpush2.msra.mxu0 0.0
  %641 = vmatprep.subr.mxu0 0.0
  %642 = vmatpush2.msra.mxu0 0.0
  %643 = vmatprep.subr.mxu0 0.0
  %644 = vmatpush2.msra.mxu0 0.0
  %645 = vmatprep.subr.mxu0 0.0
  %646 = vmatpush2.msra.mxu0 0.0
  %647 = vmatprep.subr.mxu0 0.0
  %648 = vmatpush2.msra.mxu0 0.0
  %649 = vmatprep.subr.mxu0 0.0
  %650 = vmatpush2.msra.mxu0 0.0
  %651 = vmatprep.subr.mxu0 0.0
  %652 = vmatpush2.msra.mxu0 0.0
  %653 = vmatprep.subr.mxu0 0.0
  %654 = vmatpush2.msra.mxu0 0.0
  %655 = vmatprep.subr.mxu0 0.0
  %656 = vmatpush2.msra.mxu0 0.0
  %657 = vmatprep.subr.mxu0 0.0
  %658 = vmatpush2.msra.mxu0 0.0
  %659 = vmatprep.subr.mxu0 0.0
  %660 = vmatpush2.msra.mxu0 0.0
  %661 = vmatprep.subr.mxu0 0.0
  %662 = vmatpush2.msra.mxu0 0.0
  %663 = vmatprep.subr.mxu0 0.0
  %664 = vmatpush2.msra.mxu0 0.0
  %665 = vmatprep.subr.mxu0 0.0
  %666 = vmatpush2.msra.mxu0 0.0
  %667 = vmatprep.subr.mxu0 0.0
  %668 = vmatpush2.msra.mxu0 0.0
  %669 = vmatprep.subr.mxu0 0.0
  %670 = vmatpush2.msra.mxu0 0.0
  %671 = vmatprep.mubr.f32.mxu0 0.0
  %672 = vmatmul.mubr.f32.gmra.mxu0 %v463
  %v673 = vpop.f32.mrf.mxu0
  %v674 = vadd.f32 0.0, %v673
  %v675 = vpop.f32.mrf.mxu0
  %v676 = vadd.f32 0.0, %v675
  %677 = vdwg.mxu0
  %678 = vmatprep.subr.mxu0 0.0
  %679 = vmatpush1.msra.mxu0 0.0
  %680 = vmatprep.subr.mxu0 0.0
  %681 = vmatpush1.msra.mxu0 0.0
  %682 = vmatprep.subr.mxu0 0.0
  %683 = vmatpush1.msra.mxu0 0.0
  %684 = vmatprep.subr.mxu0 0.0
  %685 = vmatpush1.msra.mxu0 0.0
  %686 = vmatprep.subr.mxu0 0.0
  %687 = vmatpush1.msra.mxu0 0.0
  %688 = vmatprep.subr.mxu0 0.0
  %689 = vmatpush1.msra.mxu0 0.0
  %690 = vmatprep.subr.mxu0 0.0
  %691 = vmatpush1.msra.mxu0 0.0
  %692 = vmatprep.subr.mxu0 0.0
  %693 = vmatpush1.msra.mxu0 %v342
  %694 = vmatprep.subr.mxu0 0.0
  %695 = vmatpush1.msra.mxu0 %v328
  %696 = vmatprep.subr.mxu0 0.0
  %697 = vmatpush1.msra.mxu0 %v314
  %698 = vmatprep.subr.mxu0 0.0
  %699 = vmatpush1.msra.mxu0 %v300
  %700 = vmatprep.subr.mxu0 0.0
  %701 = vmatpush1.msra.mxu0 %v286
  %702 = vmatprep.subr.mxu0 0.0
  %703 = vmatpush1.msra.mxu0 %v272
  %704 = vmatprep.subr.mxu0 0.0
  %705 = vmatpush1.msra.mxu0 %v258
  %706 = vmatprep.subr.mxu0 0.0
  %707 = vmatpush1.msra.mxu0 %v244
  %708 = vmatprep.subr.mxu0 0.0
  %709 = vmatpush1.msra.mxu0 %v230
  %710 = vmatprep.subr.mxu0 0.0
  %711 = vmatpush2.msra.mxu0 0.0
  %712 = vmatprep.subr.mxu0 0.0
  %713 = vmatpush2.msra.mxu0 0.0
  %714 = vmatprep.subr.mxu0 0.0
  %715 = vmatpush2.msra.mxu0 0.0
  %716 = vmatprep.subr.mxu0 0.0
  %717 = vmatpush2.msra.mxu0 0.0
  %718 = vmatprep.subr.mxu0 0.0
  %719 = vmatpush2.msra.mxu0 0.0
  %720 = vmatprep.subr.mxu0 0.0
  %721 = vmatpush2.msra.mxu0 0.0
  %722 = vmatprep.subr.mxu0 0.0
  %723 = vmatpush2.msra.mxu0 0.0
  %724 = vmatprep.subr.mxu0 0.0
  %725 = vmatpush2.msra.mxu0 0.0
  %726 = vmatprep.subr.mxu0 0.0
  %727 = vmatpush2.msra.mxu0 0.0
  %728 = vmatprep.subr.mxu0 0.0
  %729 = vmatpush2.msra.mxu0 0.0
  %730 = vmatprep.subr.mxu0 0.0
  %731 = vmatpush2.msra.mxu0 0.0
  %732 = vmatprep.subr.mxu0 0.0
  %733 = vmatpush2.msra.mxu0 0.0
  %734 = vmatprep.subr.mxu0 0.0
  %735 = vmatpush2.msra.mxu0 0.0
  %736 = vmatprep.subr.mxu0 0.0
  %737 = vmatpush2.msra.mxu0 0.0
  %738 = vmatprep.subr.mxu0 0.0
  %739 = vmatpush2.msra.mxu0 0.0
  %740 = vmatprep.subr.mxu0 0.0
  %741 = vmatpush2.msra.mxu0 0.0
  %742 = vmatprep.mubr.f32.mxu0 0.0
  %743 = vmatmul.mubr.f32.gmra.mxu0 %v463
  %v744 = vpop.f32.mrf.mxu0
  %v745 = vadd.f32 0.0, %v744
  %v746 = vpop.f32.mrf.mxu0
  %747 = vdwg.mxu0
  %v748 = vld [vmem:[%s4] sm:$0xff]
  %v749 = vld [vmem:[%s5] sm:$0xff]
  %v751 = vlaneseq
  %v752 = vshrl.u32 %v751, 7
  %v753 = vsub.s32 0, %v752
  %v754 = vrot.slane %v39, %v753
  %v755 = vlaneseq
  %v756 = vshrl.u32 %v755, 7
  %v757 = vsub.s32 1, %v756
  %v758 = vrot.slane %v39, %v757
  %v759 = vlaneseq
  %v760 = vshrl.u32 %v759, 7
  %v761 = vsub.s32 2, %v760
  %v762 = vrot.slane %v39, %v761
  %v763 = vlaneseq
  %v764 = vshrl.u32 %v763, 7
  %v765 = vsub.s32 3, %v764
  %v766 = vrot.slane %v39, %v765
  %v767 = vlaneseq
  %v768 = vshrl.u32 %v767, 7
  %v769 = vsub.s32 4, %v768
  %v770 = vrot.slane %v39, %v769
  %v771 = vlaneseq
  %v772 = vshrl.u32 %v771, 7
  %v773 = vsub.s32 5, %v772
  %v774 = vrot.slane %v39, %v773
  %v775 = vlaneseq
  %v776 = vshrl.u32 %v775, 7
  %v777 = vsub.s32 6, %v776
  %v778 = vrot.slane %v39, %v777
  %v786 = vmul.f32 %v532, %v754
  %v787 = vmul.f32 %v534, %v758
  %v788 = vmul.f32 %v603, %v762
  %v789 = vmul.f32 %v605, %v766
  %v790 = vmul.f32 %v674, %v770
  %v791 = vmul.f32 %v676, %v774
  %v792 = vmul.f32 %v745, %v778
  %v793 = vadd.f32 %v786, %v787
  %v794 = vadd.f32 %v793, %v788
  %v795 = vadd.f32 %v794, %v789
  %v796 = vadd.f32 %v795, %v790
  %v797 = vadd.f32 %v796, %v791
  %vm798 = vcmask 523264
  %v799 = vsel %vm798, %v792, 0.0
  %v800 = vadd.f32 %v797, %v799
  %801 = vadd.xlane.f32.xlu0 %v800
  %v802 = vpop.xlane.xlu0 %801
  %v803 = vmul.f32 %v786, %v532
  %v804 = vmul.f32 %v787, %v534
  %v805 = vmul.f32 %v788, %v603
  %v806 = vmul.f32 %v789, %v605
  %v807 = vmul.f32 %v790, %v674
  %v808 = vmul.f32 %v791, %v676
  %v809 = vmul.f32 %v792, %v745
  %v810 = vadd.f32 %v803, %v804
  %v811 = vadd.f32 %v810, %v805
  %v812 = vadd.f32 %v811, %v806
  %v813 = vadd.f32 %v812, %v807
  %v814 = vadd.f32 %v813, %v808
  %v815 = vsel %vm798, %v809, 0.0
  %v816 = vadd.f32 %v814, %v815
  %817 = vadd.xlane.f32.xlu0 %v816
  %v818 = vpop.xlane.xlu0 %817
  %v819 = vmul.f32 %v802, 0.001953125
  %v820 = vmul.f32 %v818, 0.001953125
  %v821 = vmul.f32 %v819, %v819
  %v822 = vsub.f32 %v820, %v821
  %v823 = vadd.f32 %v822, 1e-05
  %v824 = vrsqrt.pop %v823
  %v825 = vmul.f32 %v748, %v824
  %v826 = vmul.f32 %v819, %v825
  %v827 = vsub.f32 %v749, %v826
  %829 = vset.pattern.permute.xlu0 0
  %830 = vperm.xlu0 %829, %v825
  %v831 = vpop.permute.xlu0 %830
  %v833 = vmul.f32 %v532, %v831
  %v834 = vmul.f32 %v534, %v831
  %v835 = vmul.f32 %v603, %v831
  %v836 = vmul.f32 %v605, %v831
  %v837 = vmul.f32 %v674, %v831
  %v838 = vmul.f32 %v676, %v831
  %v839 = vmul.f32 %v745, %v831
  %841 = vset.pattern.permute.xlu0 0
  %842 = vperm.xlu0 %841, %v827
  %v843 = vpop.permute.xlu0 %842
  %v845 = vadd.f32 %v833, %v843
  %v846 = vadd.f32 %v834, %v843
  %v847 = vadd.f32 %v835, %v843
  %v848 = vadd.f32 %v836, %v843
  %v849 = vadd.f32 %v837, %v843
  %v850 = vadd.f32 %v838, %v843
  %v851 = vadd.f32 %v839, %v843
  %v852 = vmax.f32 %v845, 0.0
  %v853 = vmax.f32 %v846, 0.0
  %v854 = vmax.f32 %v847, 0.0
  %v855 = vmax.f32 %v848, 0.0
  %v856 = vmax.f32 %v849, 0.0
  %v857 = vmax.f32 %v850, 0.0
  %v858 = vmax.f32 %v851, 0.0
  %v859 = vmul.f32 %v852, %v754
  %v860 = vmul.f32 %v853, %v758
  %v861 = vmul.f32 %v854, %v762
  %v862 = vmul.f32 %v855, %v766
  %v863 = vmul.f32 %v856, %v770
  %v864 = vmul.f32 %v857, %v774
  %v865 = vmul.f32 %v858, %v778
  %v866 = vld [vmem:[%s6] sm:$0xff]
  %874 = vrot.lane.b32.xlu0 %v859, 127
  %v875 = vpop.permute.xlu0 %874
  %876 = vrot.lane.b32.xlu0 %v860, 127
  %v877 = vpop.permute.xlu0 %876
  %878 = vrot.lane.b32.xlu0 %v861, 127
  %v879 = vpop.permute.xlu0 %878
  %880 = vrot.lane.b32.xlu0 %v862, 127
  %v881 = vpop.permute.xlu0 %880
  %882 = vrot.lane.b32.xlu0 %v863, 127
  %v883 = vpop.permute.xlu0 %882
  %884 = vrot.lane.b32.xlu0 %v864, 127
  %v885 = vpop.permute.xlu0 %884
  %886 = vrot.lane.b32.xlu0 %v865, 127
  %v887 = vpop.permute.xlu0 %886
  %v888 = vsel %vm63, %v875, %v877
  %v889 = vsel %vm63, %v877, %v879
  %v890 = vsel %vm63, %v879, %v881
  %v891 = vsel %vm63, %v881, %v883
  %v892 = vsel %vm63, %v883, %v885
  %v893 = vsel %vm63, %v885, %v887
  %894 = vrot.lane.b32.xlu0 %v859, 126
  %v895 = vpop.permute.xlu0 %894
  %896 = vrot.lane.b32.xlu0 %v860, 126
  %v897 = vpop.permute.xlu0 %896
  %898 = vrot.lane.b32.xlu0 %v861, 126
  %v899 = vpop.permute.xlu0 %898
  %900 = vrot.lane.b32.xlu0 %v862, 126
  %v901 = vpop.permute.xlu0 %900
  %902 = vrot.lane.b32.xlu0 %v863, 126
  %v903 = vpop.permute.xlu0 %902
  %904 = vrot.lane.b32.xlu0 %v864, 126
  %v905 = vpop.permute.xlu0 %904
  %906 = vrot.lane.b32.xlu0 %v865, 126
  %v907 = vpop.permute.xlu0 %906
  %v908 = vsel %vm84, %v895, %v897
  %v909 = vsel %vm84, %v897, %v899
  %v910 = vsel %vm84, %v899, %v901
  %v911 = vsel %vm84, %v901, %v903
  %v912 = vsel %vm84, %v903, %v905
  %v913 = vsel %vm84, %v905, %v907
  %914 = vrot.lane.b32.xlu0 %v859, 110
  %v915 = vpop.permute.xlu0 %914
  %916 = vrot.lane.b32.xlu0 %v860, 110
  %v917 = vpop.permute.xlu0 %916
  %918 = vrot.lane.b32.xlu0 %v861, 110
  %v919 = vpop.permute.xlu0 %918
  %920 = vrot.lane.b32.xlu0 %v862, 110
  %v921 = vpop.permute.xlu0 %920
  %922 = vrot.lane.b32.xlu0 %v863, 110
  %v923 = vpop.permute.xlu0 %922
  %924 = vrot.lane.b32.xlu0 %v864, 110
  %v925 = vpop.permute.xlu0 %924
  %926 = vrot.lane.b32.xlu0 %v865, 110
  %v927 = vpop.permute.xlu0 %926
  %v928 = vsel %vm105, %v915, %v917
  %v929 = vsel %vm105, %v917, %v919
  %v930 = vsel %vm105, %v919, %v921
  %v931 = vsel %vm105, %v921, %v923
  %v932 = vsel %vm105, %v923, %v925
  %v933 = vsel %vm105, %v925, %v927
  %934 = vrot.lane.b32.xlu0 %v859, 109
  %v935 = vpop.permute.xlu0 %934
  %936 = vrot.lane.b32.xlu0 %v860, 109
  %v937 = vpop.permute.xlu0 %936
  %938 = vrot.lane.b32.xlu0 %v861, 109
  %v939 = vpop.permute.xlu0 %938
  %940 = vrot.lane.b32.xlu0 %v862, 109
  %v941 = vpop.permute.xlu0 %940
  %942 = vrot.lane.b32.xlu0 %v863, 109
  %v943 = vpop.permute.xlu0 %942
  %944 = vrot.lane.b32.xlu0 %v864, 109
  %v945 = vpop.permute.xlu0 %944
  %946 = vrot.lane.b32.xlu0 %v865, 109
  %v947 = vpop.permute.xlu0 %946
  %v948 = vsel %vm126, %v935, %v937
  %v949 = vsel %vm126, %v937, %v939
  %v950 = vsel %vm126, %v939, %v941
  %v951 = vsel %vm126, %v941, %v943
  %v952 = vsel %vm126, %v943, %v945
  %v953 = vsel %vm126, %v945, %v947
  %954 = vrot.lane.b32.xlu0 %v859, 108
  %v955 = vpop.permute.xlu0 %954
  %956 = vrot.lane.b32.xlu0 %v860, 108
  %v957 = vpop.permute.xlu0 %956
  %958 = vrot.lane.b32.xlu0 %v861, 108
  %v959 = vpop.permute.xlu0 %958
  %960 = vrot.lane.b32.xlu0 %v862, 108
  %v961 = vpop.permute.xlu0 %960
  %962 = vrot.lane.b32.xlu0 %v863, 108
  %v963 = vpop.permute.xlu0 %962
  %964 = vrot.lane.b32.xlu0 %v864, 108
  %v965 = vpop.permute.xlu0 %964
  %966 = vrot.lane.b32.xlu0 %v865, 108
  %v967 = vpop.permute.xlu0 %966
  %v968 = vsel %vm147, %v955, %v957
  %v969 = vsel %vm147, %v957, %v959
  %v970 = vsel %vm147, %v959, %v961
  %v971 = vsel %vm147, %v961, %v963
  %v972 = vsel %vm147, %v963, %v965
  %v973 = vsel %vm147, %v965, %v967
  %974 = vrot.lane.b32.xlu0 %v859, 92
  %v975 = vpop.permute.xlu0 %974
  %976 = vrot.lane.b32.xlu0 %v860, 92
  %v977 = vpop.permute.xlu0 %976
  %978 = vrot.lane.b32.xlu0 %v861, 92
  %v979 = vpop.permute.xlu0 %978
  %980 = vrot.lane.b32.xlu0 %v862, 92
  %v981 = vpop.permute.xlu0 %980
  %982 = vrot.lane.b32.xlu0 %v863, 92
  %v983 = vpop.permute.xlu0 %982
  %984 = vrot.lane.b32.xlu0 %v864, 92
  %v985 = vpop.permute.xlu0 %984
  %986 = vrot.lane.b32.xlu0 %v865, 92
  %v987 = vpop.permute.xlu0 %986
  %v988 = vsel %vm168, %v975, %v977
  %v989 = vsel %vm168, %v977, %v979
  %v990 = vsel %vm168, %v979, %v981
  %v991 = vsel %vm168, %v981, %v983
  %v992 = vsel %vm168, %v983, %v985
  %v993 = vsel %vm168, %v985, %v987
  %994 = vrot.lane.b32.xlu0 %v859, 91
  %v995 = vpop.permute.xlu0 %994
  %996 = vrot.lane.b32.xlu0 %v860, 91
  %v997 = vpop.permute.xlu0 %996
  %998 = vrot.lane.b32.xlu0 %v861, 91
  %v999 = vpop.permute.xlu0 %998
  %1000 = vrot.lane.b32.xlu0 %v862, 91
  %v1001 = vpop.permute.xlu0 %1000
  %1002 = vrot.lane.b32.xlu0 %v863, 91
  %v1003 = vpop.permute.xlu0 %1002
  %1004 = vrot.lane.b32.xlu0 %v864, 91
  %v1005 = vpop.permute.xlu0 %1004
  %1006 = vrot.lane.b32.xlu0 %v865, 91
  %v1007 = vpop.permute.xlu0 %1006
  %v1008 = vsel %vm189, %v995, %v997
  %v1009 = vsel %vm189, %v997, %v999
  %v1010 = vsel %vm189, %v999, %v1001
  %v1011 = vsel %vm189, %v1001, %v1003
  %v1012 = vsel %vm189, %v1003, %v1005
  %v1013 = vsel %vm189, %v1005, %v1007
  %1014 = vrot.lane.b32.xlu0 %v859, 90
  %v1015 = vpop.permute.xlu0 %1014
  %1016 = vrot.lane.b32.xlu0 %v860, 90
  %v1017 = vpop.permute.xlu0 %1016
  %1018 = vrot.lane.b32.xlu0 %v861, 90
  %v1019 = vpop.permute.xlu0 %1018
  %1020 = vrot.lane.b32.xlu0 %v862, 90
  %v1021 = vpop.permute.xlu0 %1020
  %1022 = vrot.lane.b32.xlu0 %v863, 90
  %v1023 = vpop.permute.xlu0 %1022
  %1024 = vrot.lane.b32.xlu0 %v864, 90
  %v1025 = vpop.permute.xlu0 %1024
  %1026 = vrot.lane.b32.xlu0 %v865, 90
  %v1027 = vpop.permute.xlu0 %1026
  %v1028 = vsel %vm210, %v1015, %v1017
  %v1029 = vsel %vm210, %v1017, %v1019
  %v1030 = vsel %vm210, %v1019, %v1021
  %v1031 = vsel %vm210, %v1021, %v1023
  %v1032 = vsel %vm210, %v1023, %v1025
  %v1033 = vsel %vm210, %v1025, %v1027
  %1034 = vrot.lane.b32.xlu0 %v859, 115
  %v1035 = vpop.permute.xlu0 %1034
  %1036 = vrot.lane.b32.xlu0 %v860, 115
  %v1037 = vpop.permute.xlu0 %1036
  %1038 = vrot.lane.b32.xlu0 %v861, 115
  %v1039 = vpop.permute.xlu0 %1038
  %1040 = vrot.lane.b32.xlu0 %v862, 115
  %v1041 = vpop.permute.xlu0 %1040
  %1042 = vrot.lane.b32.xlu0 %v863, 115
  %v1043 = vpop.permute.xlu0 %1042
  %1044 = vrot.lane.b32.xlu0 %v864, 115
  %v1045 = vpop.permute.xlu0 %1044
  %1046 = vrot.lane.b32.xlu0 %v865, 115
  %v1047 = vpop.permute.xlu0 %1046
  %1048 = vrot.lane.b32.xlu0 %v888, 115
  %v1049 = vpop.permute.xlu0 %1048
  %1050 = vrot.lane.b32.xlu0 %v889, 115
  %v1051 = vpop.permute.xlu0 %1050
  %1052 = vrot.lane.b32.xlu0 %v890, 115
  %v1053 = vpop.permute.xlu0 %1052
  %1054 = vrot.lane.b32.xlu0 %v891, 115
  %v1055 = vpop.permute.xlu0 %1054
  %1056 = vrot.lane.b32.xlu0 %v892, 115
  %v1057 = vpop.permute.xlu0 %1056
  %1058 = vrot.lane.b32.xlu0 %v893, 115
  %v1059 = vpop.permute.xlu0 %1058
  %1060 = vrot.lane.b32.xlu0 %v887, 115
  %v1061 = vpop.permute.xlu0 %1060
  %1062 = vrot.lane.b32.xlu0 %v908, 115
  %v1063 = vpop.permute.xlu0 %1062
  %1064 = vrot.lane.b32.xlu0 %v909, 115
  %v1065 = vpop.permute.xlu0 %1064
  %1066 = vrot.lane.b32.xlu0 %v910, 115
  %v1067 = vpop.permute.xlu0 %1066
  %1068 = vrot.lane.b32.xlu0 %v911, 115
  %v1069 = vpop.permute.xlu0 %1068
  %1070 = vrot.lane.b32.xlu0 %v912, 115
  %v1071 = vpop.permute.xlu0 %1070
  %1072 = vrot.lane.b32.xlu0 %v913, 115
  %v1073 = vpop.permute.xlu0 %1072
  %1074 = vrot.lane.b32.xlu0 %v907, 115
  %v1075 = vpop.permute.xlu0 %1074
  %1076 = vrot.lane.b32.xlu0 %v928, 115
  %v1077 = vpop.permute.xlu0 %1076
  %1078 = vrot.lane.b32.xlu0 %v929, 115
  %v1079 = vpop.permute.xlu0 %1078
  %1080 = vrot.lane.b32.xlu0 %v930, 115
  %v1081 = vpop.permute.xlu0 %1080
  %1082 = vrot.lane.b32.xlu0 %v931, 115
  %v1083 = vpop.permute.xlu0 %1082
  %1084 = vrot.lane.b32.xlu0 %v932, 115
  %v1085 = vpop.permute.xlu0 %1084
  %1086 = vrot.lane.b32.xlu0 %v933, 115
  %v1087 = vpop.permute.xlu0 %1086
  %1088 = vrot.lane.b32.xlu0 %v927, 115
  %v1089 = vpop.permute.xlu0 %1088
  %1090 = vrot.lane.b32.xlu0 %v948, 115
  %v1091 = vpop.permute.xlu0 %1090
  %1092 = vrot.lane.b32.xlu0 %v949, 115
  %v1093 = vpop.permute.xlu0 %1092
  %1094 = vrot.lane.b32.xlu0 %v950, 115
  %v1095 = vpop.permute.xlu0 %1094
  %1096 = vrot.lane.b32.xlu0 %v951, 115
  %v1097 = vpop.permute.xlu0 %1096
  %1098 = vrot.lane.b32.xlu0 %v952, 115
  %v1099 = vpop.permute.xlu0 %1098
  %1100 = vrot.lane.b32.xlu0 %v953, 115
  %v1101 = vpop.permute.xlu0 %1100
  %1102 = vrot.lane.b32.xlu0 %v947, 115
  %v1103 = vpop.permute.xlu0 %1102
  %1104 = vrot.lane.b32.xlu0 %v968, 115
  %v1105 = vpop.permute.xlu0 %1104
  %1106 = vrot.lane.b32.xlu0 %v969, 115
  %v1107 = vpop.permute.xlu0 %1106
  %1108 = vrot.lane.b32.xlu0 %v970, 115
  %v1109 = vpop.permute.xlu0 %1108
  %1110 = vrot.lane.b32.xlu0 %v971, 115
  %v1111 = vpop.permute.xlu0 %1110
  %1112 = vrot.lane.b32.xlu0 %v972, 115
  %v1113 = vpop.permute.xlu0 %1112
  %1114 = vrot.lane.b32.xlu0 %v973, 115
  %v1115 = vpop.permute.xlu0 %1114
  %1116 = vrot.lane.b32.xlu0 %v967, 115
  %v1117 = vpop.permute.xlu0 %1116
  %1118 = vrot.lane.b32.xlu0 %v988, 115
  %v1119 = vpop.permute.xlu0 %1118
  %1120 = vrot.lane.b32.xlu0 %v989, 115
  %v1121 = vpop.permute.xlu0 %1120
  %1122 = vrot.lane.b32.xlu0 %v990, 115
  %v1123 = vpop.permute.xlu0 %1122
  %1124 = vrot.lane.b32.xlu0 %v991, 115
  %v1125 = vpop.permute.xlu0 %1124
  %1126 = vrot.lane.b32.xlu0 %v992, 115
  %v1127 = vpop.permute.xlu0 %1126
  %1128 = vrot.lane.b32.xlu0 %v993, 115
  %v1129 = vpop.permute.xlu0 %1128
  %1130 = vrot.lane.b32.xlu0 %v987, 115
  %v1131 = vpop.permute.xlu0 %1130
  %1132 = vrot.lane.b32.xlu0 %v1008, 115
  %v1133 = vpop.permute.xlu0 %1132
  %1134 = vrot.lane.b32.xlu0 %v1009, 115
  %v1135 = vpop.permute.xlu0 %1134
  %1136 = vrot.lane.b32.xlu0 %v1010, 115
  %v1137 = vpop.permute.xlu0 %1136
  %1138 = vrot.lane.b32.xlu0 %v1011, 115
  %v1139 = vpop.permute.xlu0 %1138
  %1140 = vrot.lane.b32.xlu0 %v1012, 115
  %v1141 = vpop.permute.xlu0 %1140
  %1142 = vrot.lane.b32.xlu0 %v1013, 115
  %v1143 = vpop.permute.xlu0 %1142
  %1144 = vrot.lane.b32.xlu0 %v1007, 115
  %v1145 = vpop.permute.xlu0 %1144
  %1146 = vrot.lane.b32.xlu0 %v1028, 115
  %v1147 = vpop.permute.xlu0 %1146
  %1148 = vrot.lane.b32.xlu0 %v1029, 115
  %v1149 = vpop.permute.xlu0 %1148
  %1150 = vrot.lane.b32.xlu0 %v1030, 115
  %v1151 = vpop.permute.xlu0 %1150
  %1152 = vrot.lane.b32.xlu0 %v1031, 115
  %v1153 = vpop.permute.xlu0 %1152
  %1154 = vrot.lane.b32.xlu0 %v1032, 115
  %v1155 = vpop.permute.xlu0 %1154
  %1156 = vrot.lane.b32.xlu0 %v1033, 115
  %v1157 = vpop.permute.xlu0 %1156
  %1158 = vrot.lane.b32.xlu0 %v1027, 115
  %v1159 = vpop.permute.xlu0 %1158
  %v1160 = vsel %vm343, %v1035, %v1037
  %v1161 = vsel %vm343, %v1037, %v1039
  %v1162 = vsel %vm343, %v1039, %v1041
  %v1163 = vsel %vm343, %v1041, %v1043
  %v1164 = vsel %vm343, %v1043, %v1045
  %v1165 = vsel %vm343, %v1045, %v1047
  %v1166 = vsel %vm343, %v1049, %v1051
  %v1167 = vsel %vm343, %v1051, %v1053
  %v1168 = vsel %vm343, %v1053, %v1055
  %v1169 = vsel %vm343, %v1055, %v1057
  %v1170 = vsel %vm343, %v1057, %v1059
  %v1171 = vsel %vm343, %v1059, %v1061
  %v1172 = vsel %vm343, %v1063, %v1065
  %v1173 = vsel %vm343, %v1065, %v1067
  %v1174 = vsel %vm343, %v1067, %v1069
  %v1175 = vsel %vm343, %v1069, %v1071
  %v1176 = vsel %vm343, %v1071, %v1073
  %v1177 = vsel %vm343, %v1073, %v1075
  %v1178 = vsel %vm343, %v1077, %v1079
  %v1179 = vsel %vm343, %v1079, %v1081
  %v1180 = vsel %vm343, %v1081, %v1083
  %v1181 = vsel %vm343, %v1083, %v1085
  %v1182 = vsel %vm343, %v1085, %v1087
  %v1183 = vsel %vm343, %v1087, %v1089
  %v1184 = vsel %vm343, %v1091, %v1093
  %v1185 = vsel %vm343, %v1093, %v1095
  %v1186 = vsel %vm343, %v1095, %v1097
  %v1187 = vsel %vm343, %v1097, %v1099
  %v1188 = vsel %vm343, %v1099, %v1101
  %v1189 = vsel %vm343, %v1101, %v1103
  %v1190 = vsel %vm343, %v1105, %v1107
  %v1191 = vsel %vm343, %v1107, %v1109
  %v1192 = vsel %vm343, %v1109, %v1111
  %v1193 = vsel %vm343, %v1111, %v1113
  %v1194 = vsel %vm343, %v1113, %v1115
  %v1195 = vsel %vm343, %v1115, %v1117
  %v1196 = vsel %vm343, %v1119, %v1121
  %v1197 = vsel %vm343, %v1121, %v1123
  %v1198 = vsel %vm343, %v1123, %v1125
  %v1199 = vsel %vm343, %v1125, %v1127
  %v1200 = vsel %vm343, %v1127, %v1129
  %v1201 = vsel %vm343, %v1129, %v1131
  %v1202 = vsel %vm343, %v1133, %v1135
  %v1203 = vsel %vm343, %v1135, %v1137
  %v1204 = vsel %vm343, %v1137, %v1139
  %v1205 = vsel %vm343, %v1139, %v1141
  %v1206 = vsel %vm343, %v1141, %v1143
  %v1207 = vsel %vm343, %v1143, %v1145
  %v1208 = vsel %vm343, %v1147, %v1149
  %v1209 = vsel %vm343, %v1149, %v1151
  %v1210 = vsel %vm343, %v1151, %v1153
  %v1211 = vsel %vm343, %v1153, %v1155
  %v1212 = vsel %vm343, %v1155, %v1157
  %v1213 = vsel %vm343, %v1157, %v1159
  %v1269 = vsel %vm461, %v866, 0
  %1271 = vmatprep.subr.mxu0 0.0
  %1272 = vmatpush1.msra.mxu0 0.0
  %1273 = vmatprep.subr.mxu0 0.0
  %1274 = vmatpush1.msra.mxu0 0.0
  %1275 = vmatprep.subr.mxu0 0.0
  %1276 = vmatpush1.msra.mxu0 0.0
  %1277 = vmatprep.subr.mxu0 0.0
  %1278 = vmatpush1.msra.mxu0 0.0
  %1279 = vmatprep.subr.mxu0 0.0
  %1280 = vmatpush1.msra.mxu0 0.0
  %1281 = vmatprep.subr.mxu0 0.0
  %1282 = vmatpush1.msra.mxu0 0.0
  %1283 = vmatprep.subr.mxu0 0.0
  %1284 = vmatpush1.msra.mxu0 0.0
  %1285 = vmatprep.subr.mxu0 %v1209
  %1286 = vmatpush1.msra.mxu0 %v1208
  %1287 = vmatprep.subr.mxu0 %v1203
  %1288 = vmatpush1.msra.mxu0 %v1202
  %1289 = vmatprep.subr.mxu0 %v1197
  %1290 = vmatpush1.msra.mxu0 %v1196
  %1291 = vmatprep.subr.mxu0 %v1191
  %1292 = vmatpush1.msra.mxu0 %v1190
  %1293 = vmatprep.subr.mxu0 %v1185
  %1294 = vmatpush1.msra.mxu0 %v1184
  %1295 = vmatprep.subr.mxu0 %v1179
  %1296 = vmatpush1.msra.mxu0 %v1178
  %1297 = vmatprep.subr.mxu0 %v1173
  %1298 = vmatpush1.msra.mxu0 %v1172
  %1299 = vmatprep.subr.mxu0 %v1167
  %1300 = vmatpush1.msra.mxu0 %v1166
  %1301 = vmatprep.subr.mxu0 %v1161
  %1302 = vmatpush1.msra.mxu0 %v1160
  %1303 = vmatprep.subr.mxu0 0.0
  %1304 = vmatpush2.msra.mxu0 0.0
  %1305 = vmatprep.subr.mxu0 0.0
  %1306 = vmatpush2.msra.mxu0 0.0
  %1307 = vmatprep.subr.mxu0 0.0
  %1308 = vmatpush2.msra.mxu0 0.0
  %1309 = vmatprep.subr.mxu0 0.0
  %1310 = vmatpush2.msra.mxu0 0.0
  %1311 = vmatprep.subr.mxu0 0.0
  %1312 = vmatpush2.msra.mxu0 0.0
  %1313 = vmatprep.subr.mxu0 0.0
  %1314 = vmatpush2.msra.mxu0 0.0
  %1315 = vmatprep.subr.mxu0 0.0
  %1316 = vmatpush2.msra.mxu0 0.0
  %1317 = vmatprep.subr.mxu0 0.0
  %1318 = vmatpush2.msra.mxu0 0.0
  %1319 = vmatprep.subr.mxu0 0.0
  %1320 = vmatpush2.msra.mxu0 0.0
  %1321 = vmatprep.subr.mxu0 0.0
  %1322 = vmatpush2.msra.mxu0 0.0
  %1323 = vmatprep.subr.mxu0 0.0
  %1324 = vmatpush2.msra.mxu0 0.0
  %1325 = vmatprep.subr.mxu0 0.0
  %1326 = vmatpush2.msra.mxu0 0.0
  %1327 = vmatprep.subr.mxu0 0.0
  %1328 = vmatpush2.msra.mxu0 0.0
  %1329 = vmatprep.subr.mxu0 0.0
  %1330 = vmatpush2.msra.mxu0 0.0
  %1331 = vmatprep.subr.mxu0 0.0
  %1332 = vmatpush2.msra.mxu0 0.0
  %1333 = vmatprep.subr.mxu0 0.0
  %1334 = vmatpush2.msra.mxu0 0.0
  %1335 = vmatprep.mubr.f32.mxu0 0.0
  %1336 = vmatmul.mubr.f32.gmra.mxu0 %v1269
  %v1337 = vpop.f32.mrf.mxu0
  %v1338 = vadd.f32 0.0, %v1337
  %v1339 = vpop.f32.mrf.mxu0
  %v1340 = vadd.f32 0.0, %v1339
  %1341 = vdwg.mxu0
  %1342 = vmatprep.subr.mxu0 0.0
  %1343 = vmatpush1.msra.mxu0 0.0
  %1344 = vmatprep.subr.mxu0 0.0
  %1345 = vmatpush1.msra.mxu0 0.0
  %1346 = vmatprep.subr.mxu0 0.0
  %1347 = vmatpush1.msra.mxu0 0.0
  %1348 = vmatprep.subr.mxu0 0.0
  %1349 = vmatpush1.msra.mxu0 0.0
  %1350 = vmatprep.subr.mxu0 0.0
  %1351 = vmatpush1.msra.mxu0 0.0
  %1352 = vmatprep.subr.mxu0 0.0
  %1353 = vmatpush1.msra.mxu0 0.0
  %1354 = vmatprep.subr.mxu0 0.0
  %1355 = vmatpush1.msra.mxu0 0.0
  %1356 = vmatprep.subr.mxu0 %v1211
  %1357 = vmatpush1.msra.mxu0 %v1210
  %1358 = vmatprep.subr.mxu0 %v1205
  %1359 = vmatpush1.msra.mxu0 %v1204
  %1360 = vmatprep.subr.mxu0 %v1199
  %1361 = vmatpush1.msra.mxu0 %v1198
  %1362 = vmatprep.subr.mxu0 %v1193
  %1363 = vmatpush1.msra.mxu0 %v1192
  %1364 = vmatprep.subr.mxu0 %v1187
  %1365 = vmatpush1.msra.mxu0 %v1186
  %1366 = vmatprep.subr.mxu0 %v1181
  %1367 = vmatpush1.msra.mxu0 %v1180
  %1368 = vmatprep.subr.mxu0 %v1175
  %1369 = vmatpush1.msra.mxu0 %v1174
  %1370 = vmatprep.subr.mxu0 %v1169
  %1371 = vmatpush1.msra.mxu0 %v1168
  %1372 = vmatprep.subr.mxu0 %v1163
  %1373 = vmatpush1.msra.mxu0 %v1162
  %1374 = vmatprep.subr.mxu0 0.0
  %1375 = vmatpush2.msra.mxu0 0.0
  %1376 = vmatprep.subr.mxu0 0.0
  %1377 = vmatpush2.msra.mxu0 0.0
  %1378 = vmatprep.subr.mxu0 0.0
  %1379 = vmatpush2.msra.mxu0 0.0
  %1380 = vmatprep.subr.mxu0 0.0
  %1381 = vmatpush2.msra.mxu0 0.0
  %1382 = vmatprep.subr.mxu0 0.0
  %1383 = vmatpush2.msra.mxu0 0.0
  %1384 = vmatprep.subr.mxu0 0.0
  %1385 = vmatpush2.msra.mxu0 0.0
  %1386 = vmatprep.subr.mxu0 0.0
  %1387 = vmatpush2.msra.mxu0 0.0
  %1388 = vmatprep.subr.mxu0 0.0
  %1389 = vmatpush2.msra.mxu0 0.0
  %1390 = vmatprep.subr.mxu0 0.0
  %1391 = vmatpush2.msra.mxu0 0.0
  %1392 = vmatprep.subr.mxu0 0.0
  %1393 = vmatpush2.msra.mxu0 0.0
  %1394 = vmatprep.subr.mxu0 0.0
  %1395 = vmatpush2.msra.mxu0 0.0
  %1396 = vmatprep.subr.mxu0 0.0
  %1397 = vmatpush2.msra.mxu0 0.0
  %1398 = vmatprep.subr.mxu0 0.0
  %1399 = vmatpush2.msra.mxu0 0.0
  %1400 = vmatprep.subr.mxu0 0.0
  %1401 = vmatpush2.msra.mxu0 0.0
  %1402 = vmatprep.subr.mxu0 0.0
  %1403 = vmatpush2.msra.mxu0 0.0
  %1404 = vmatprep.subr.mxu0 0.0
  %1405 = vmatpush2.msra.mxu0 0.0
  %1406 = vmatprep.mubr.f32.mxu0 0.0
  %1407 = vmatmul.mubr.f32.gmra.mxu0 %v1269
  %v1408 = vpop.f32.mrf.mxu0
  %v1409 = vadd.f32 0.0, %v1408
  %v1410 = vpop.f32.mrf.mxu0
  %v1411 = vadd.f32 0.0, %v1410
  %1412 = vdwg.mxu0
  %1413 = vmatprep.subr.mxu0 0.0
  %1414 = vmatpush1.msra.mxu0 0.0
  %1415 = vmatprep.subr.mxu0 0.0
  %1416 = vmatpush1.msra.mxu0 0.0
  %1417 = vmatprep.subr.mxu0 0.0
  %1418 = vmatpush1.msra.mxu0 0.0
  %1419 = vmatprep.subr.mxu0 0.0
  %1420 = vmatpush1.msra.mxu0 0.0
  %1421 = vmatprep.subr.mxu0 0.0
  %1422 = vmatpush1.msra.mxu0 0.0
  %1423 = vmatprep.subr.mxu0 0.0
  %1424 = vmatpush1.msra.mxu0 0.0
  %1425 = vmatprep.subr.mxu0 0.0
  %1426 = vmatpush1.msra.mxu0 0.0
  %1427 = vmatprep.subr.mxu0 %v1213
  %1428 = vmatpush1.msra.mxu0 %v1212
  %1429 = vmatprep.subr.mxu0 %v1207
  %1430 = vmatpush1.msra.mxu0 %v1206
  %1431 = vmatprep.subr.mxu0 %v1201
  %1432 = vmatpush1.msra.mxu0 %v1200
  %1433 = vmatprep.subr.mxu0 %v1195
  %1434 = vmatpush1.msra.mxu0 %v1194
  %1435 = vmatprep.subr.mxu0 %v1189
  %1436 = vmatpush1.msra.mxu0 %v1188
  %1437 = vmatprep.subr.mxu0 %v1183
  %1438 = vmatpush1.msra.mxu0 %v1182
  %1439 = vmatprep.subr.mxu0 %v1177
  %1440 = vmatpush1.msra.mxu0 %v1176
  %1441 = vmatprep.subr.mxu0 %v1171
  %1442 = vmatpush1.msra.mxu0 %v1170
  %1443 = vmatprep.subr.mxu0 %v1165
  %1444 = vmatpush1.msra.mxu0 %v1164
  %1445 = vmatprep.subr.mxu0 0.0
  %1446 = vmatpush2.msra.mxu0 0.0
  %1447 = vmatprep.subr.mxu0 0.0
  %1448 = vmatpush2.msra.mxu0 0.0
  %1449 = vmatprep.subr.mxu0 0.0
  %1450 = vmatpush2.msra.mxu0 0.0
  %1451 = vmatprep.subr.mxu0 0.0
  %1452 = vmatpush2.msra.mxu0 0.0
  %1453 = vmatprep.subr.mxu0 0.0
  %1454 = vmatpush2.msra.mxu0 0.0
  %1455 = vmatprep.subr.mxu0 0.0
  %1456 = vmatpush2.msra.mxu0 0.0
  %1457 = vmatprep.subr.mxu0 0.0
  %1458 = vmatpush2.msra.mxu0 0.0
  %1459 = vmatprep.subr.mxu0 0.0
  %1460 = vmatpush2.msra.mxu0 0.0
  %1461 = vmatprep.subr.mxu0 0.0
  %1462 = vmatpush2.msra.mxu0 0.0
  %1463 = vmatprep.subr.mxu0 0.0
  %1464 = vmatpush2.msra.mxu0 0.0
  %1465 = vmatprep.subr.mxu0 0.0
  %1466 = vmatpush2.msra.mxu0 0.0
  %1467 = vmatprep.subr.mxu0 0.0
  %1468 = vmatpush2.msra.mxu0 0.0
  %1469 = vmatprep.subr.mxu0 0.0
  %1470 = vmatpush2.msra.mxu0 0.0
  %1471 = vmatprep.subr.mxu0 0.0
  %1472 = vmatpush2.msra.mxu0 0.0
  %1473 = vmatprep.subr.mxu0 0.0
  %1474 = vmatpush2.msra.mxu0 0.0
  %1475 = vmatprep.subr.mxu0 0.0
  %1476 = vmatpush2.msra.mxu0 0.0
  %1477 = vmatprep.mubr.f32.mxu0 0.0
  %1478 = vmatmul.mubr.f32.gmra.mxu0 %v1269
  %v1479 = vpop.f32.mrf.mxu0
  %v1480 = vadd.f32 0.0, %v1479
  %v1481 = vpop.f32.mrf.mxu0
  %v1482 = vadd.f32 0.0, %v1481
  %1483 = vdwg.mxu0
  %v1484 = vld [vmem:[%s7] sm:$0xff]
  %v1485 = vld [vmem:[%s8] sm:$0xff]
  %v1487 = vlaneseq
  %v1488 = vshrl.u32 %v1487, 7
  %v1489 = vsub.s32 0, %v1488
  %v1490 = vrot.slane %v40, %v1489
  %v1491 = vlaneseq
  %v1492 = vshrl.u32 %v1491, 7
  %v1493 = vsub.s32 1, %v1492
  %v1494 = vrot.slane %v40, %v1493
  %v1495 = vlaneseq
  %v1496 = vshrl.u32 %v1495, 7
  %v1497 = vsub.s32 2, %v1496
  %v1498 = vrot.slane %v40, %v1497
  %v1499 = vlaneseq
  %v1500 = vshrl.u32 %v1499, 7
  %v1501 = vsub.s32 3, %v1500
  %v1502 = vrot.slane %v40, %v1501
  %v1503 = vlaneseq
  %v1504 = vshrl.u32 %v1503, 7
  %v1505 = vsub.s32 4, %v1504
  %v1506 = vrot.slane %v40, %v1505
  %v1507 = vlaneseq
  %v1508 = vshrl.u32 %v1507, 7
  %v1509 = vsub.s32 5, %v1508
  %v1510 = vrot.slane %v40, %v1509
  %v1517 = vmul.f32 %v1338, %v1490
  %v1518 = vmul.f32 %v1340, %v1494
  %v1519 = vmul.f32 %v1409, %v1498
  %v1520 = vmul.f32 %v1411, %v1502
  %v1521 = vmul.f32 %v1480, %v1506
  %v1522 = vmul.f32 %v1482, %v1510
  %v1523 = vadd.f32 %v1517, %v1518
  %v1524 = vadd.f32 %v1523, %v1519
  %v1525 = vadd.f32 %v1524, %v1520
  %v1526 = vadd.f32 %v1525, %v1521
  %v1527 = vadd.f32 %v1526, %v1522
  %1528 = vadd.xlane.f32.xlu0 %v1527
  %v1529 = vpop.xlane.xlu0 %1528
  %v1530 = vmul.f32 %v1517, %v1338
  %v1531 = vmul.f32 %v1518, %v1340
  %v1532 = vmul.f32 %v1519, %v1409
  %v1533 = vmul.f32 %v1520, %v1411
  %v1534 = vmul.f32 %v1521, %v1480
  %v1535 = vmul.f32 %v1522, %v1482
  %v1536 = vadd.f32 %v1530, %v1531
  %v1537 = vadd.f32 %v1536, %v1532
  %v1538 = vadd.f32 %v1537, %v1533
  %v1539 = vadd.f32 %v1538, %v1534
  %v1540 = vadd.f32 %v1539, %v1535
  %1541 = vadd.xlane.f32.xlu0 %v1540
  %v1542 = vpop.xlane.xlu0 %1541
  %v1543 = vmul.f32 %v1529, 0.001953125
  %v1544 = vmul.f32 %v1542, 0.001953125
  %v1545 = vmul.f32 %v1543, %v1543
  %v1546 = vsub.f32 %v1544, %v1545
  %v1547 = vadd.f32 %v1546, 1e-05
  %v1548 = vrsqrt.pop %v1547
  %v1549 = vmul.f32 %v1484, %v1548
  %v1550 = vmul.f32 %v1543, %v1549
  %v1551 = vsub.f32 %v1485, %v1550
  %1553 = vset.pattern.permute.xlu0 0
  %1554 = vperm.xlu0 %1553, %v1549
  %v1555 = vpop.permute.xlu0 %1554
  %v1557 = vmul.f32 %v1338, %v1555
  %v1558 = vmul.f32 %v1340, %v1555
  %v1559 = vmul.f32 %v1409, %v1555
  %v1560 = vmul.f32 %v1411, %v1555
  %v1561 = vmul.f32 %v1480, %v1555
  %v1562 = vmul.f32 %v1482, %v1555
  %1564 = vset.pattern.permute.xlu0 0
  %1565 = vperm.xlu0 %1564, %v1551
  %v1566 = vpop.permute.xlu0 %1565
  %v1568 = vadd.f32 %v1557, %v1566
  %v1569 = vadd.f32 %v1558, %v1566
  %v1570 = vadd.f32 %v1559, %v1566
  %v1571 = vadd.f32 %v1560, %v1566
  %v1572 = vadd.f32 %v1561, %v1566
  %v1573 = vadd.f32 %v1562, %v1566
  %1574 = vrot.lane.b32.xlu0 %v32, 64
  %v1575 = vpop.permute.xlu0 %1574
  %1576 = vrot.lane.b32.xlu0 %v33, 64
  %v1577 = vpop.permute.xlu0 %1576
  %1578 = vrot.lane.b32.xlu0 %v34, 64
  %v1579 = vpop.permute.xlu0 %1578
  %1580 = vrot.lane.b32.xlu0 %v35, 64
  %v1581 = vpop.permute.xlu0 %1580
  %1582 = vrot.lane.b32.xlu0 %v36, 64
  %v1583 = vpop.permute.xlu0 %1582
  %1584 = vrot.lane.b32.xlu0 %v37, 64
  %v1585 = vpop.permute.xlu0 %1584
  %1586 = vrot.lane.b32.xlu0 %v38, 64
  %v1587 = vpop.permute.xlu0 %1586
  %v1588 = vsel %vm798, %v1575, %v1577
  %v1589 = vsel %vm798, %v1577, %v1579
  %v1590 = vsel %vm798, %v1579, %v1581
  %v1591 = vsel %vm798, %v1581, %v1583
  %v1592 = vsel %vm798, %v1583, %v1585
  %v1593 = vsel %vm798, %v1585, %v1587
  %v1600 = vadd.f32 %v1568, %v1588
  %v1601 = vadd.f32 %v1569, %v1589
  %v1602 = vadd.f32 %v1570, %v1590
  %v1603 = vadd.f32 %v1571, %v1591
  %v1604 = vadd.f32 %v1572, %v1592
  %v1605 = vadd.f32 %v1573, %v1593
  %v1606 = vmax.f32 %v1600, 0.0
  %v1607 = vmax.f32 %v1601, 0.0
  %v1608 = vmax.f32 %v1602, 0.0
  %v1609 = vmax.f32 %v1603, 0.0
  %v1610 = vmax.f32 %v1604, 0.0
  %v1611 = vmax.f32 %v1605, 0.0
  %1612 = vst [vmem:[%s9] sm:$0xff] %v1606
  %1613 = vst [vmem:[%s9 + $0x8] sm:$0xff] %v1607
  %1614 = vst [vmem:[%s9 + $0x10] sm:$0xff] %v1608
  %1615 = vst [vmem:[%s9 + $0x18] sm:$0xff] %v1609
  %1616 = vst [vmem:[%s9 + $0x20] sm:$0xff] %v1610
  %1617 = vst [vmem:[%s9 + $0x28] sm:$0xff] %v1611
  // Predicated region
  $region38: #{basic_block_pallas.1} parent=0 // pred_check
    _
  $region39: #{basic_block_pallas.1} parent=0 // pred_check_branch
    %1619 = sbr.rel (0) target = $region41
  $region40: #{basic_block_pallas.1} parent=0 // pred_region
    _
  $region41: #{basic_block_pallas.1} parent=0 // pred_fallthru
    _
  // Predicated region
  $region42: #{basic_block_pallas.1} parent=0 // pred_check
    _
  $region43: #{basic_block_pallas.1} parent=0 // pred_check_branch
    %1621 = sbr.rel (0) target = $region45
  $region44: #{basic_block_pallas.1} parent=0 // pred_region
    _
  $region45: #{basic_block_pallas.1} parent=0 // pred_fallthru
    _

</llo_original>
